<compile_context>
chip_gen: v6e
topology: v6e:2x2x1
jax: 0.10.0
libtpu: 0.0.40
codegen_flags: <defaults>
</compile_context>

<pallas_src>
import functools
import math

import jax
import jax.numpy as jnp
from jax.experimental import pallas as pl
from jax.experimental.pallas import tpu as pltpu


def _round_up(x, m):
    return ((x + m - 1) // m) * m


def _cnn_kernel(x_ref, w_ref, b_ref, out_ref, z_ref, acc_ref, *, seg_len, l_out):
    """Fused Conv1d + max-over-time for a block of words.

    x_ref:   (n_words * seg_len, C_in)          bf16, channels-last, zero-padded rows
    w_ref:   (K, C_in, F_pad)                   bf16, per-tap weight slices (C_out -> 128)
    b_ref:   (1, F_pad)                         f32
    out_ref: (n_words, F_pad)                   f32
    z_ref:   (n_words * seg_len, F_pad)         f32 scratch (per-tap matmul result)
    acc_ref: (n_words * seg_len - K + 1, F_pad) f32 scratch (shifted-tap accumulator)
    """
    k = w_ref.shape[0]
    rows_v = acc_ref.shape[0]
    n_words = out_ref.shape[0]

    xv = x_ref[...]                      # single aligned load, reused for all K taps
    for i in range(k):                   # K is small & static -> unrolled
        # Conv as K shifted matmuls (MXU, f32 accumulate): acc[r] += x[r+i] @ w_i
        z_ref[...] = jnp.dot(xv, w_ref[i], preferred_element_type=jnp.float32)
        zi = z_ref[pl.ds(i, rows_v), :]  # static small sublane offset on f32 scratch
        if i == 0:
            acc_ref[...] = zi
        else:
            acc_ref[...] += zi

    bias = b_ref[...]                    # bias added after the max (commutes with max)
    for w in range(n_words):             # per word: max over the l_out valid positions
        seg = acc_ref[pl.ds(w * seg_len, l_out), :]       # aligned start (seg_len % 8 == 0)
        out_ref[pl.ds(w, 1), :] = (
            jnp.max(seg, axis=0, keepdims=True) + bias).astype(out_ref.dtype)


def cnn_forward(x, weight, bias, *, padding_size, tile_words=8,
                compute_dtype=jnp.bfloat16):
    """x: (N, C_in, L) f32; weight: (C_out, C_in, K); bias: (C_out,) -> (N, C_out) f32."""
    n, c_in, length = x.shape
    c_out, c_in_w, k = weight.shape
    assert c_in_w == c_in
    l_pad = length + 2 * padding_size
    l_out = l_pad - k + 1
    assert l_out >= 1

    seg_len = _round_up(l_pad, 8)            # per-word row segment, sublane aligned
    f_pad = _round_up(c_out, 128)            # lane-dense output channels
    tile_words = max(8, (min(tile_words, _round_up(n, 8)) // 8) * 8)
    n_pad = _round_up(n, tile_words)

    # --- wrapper-side layout plumbing (cheap: O(N*L*C_in), no K x blow-up) ---
    x_nlc = jnp.transpose(x, (0, 2, 1))                          # (N, L, C_in)
    x_slab = jnp.pad(
        x_nlc,
        ((0, n_pad - n),
         (padding_size, seg_len - length - padding_size),
         (0, 0)))                                                # (N_pad, seg_len, C_in)
    x_slab = x_slab.reshape(n_pad * seg_len, c_in).astype(compute_dtype)

    w_taps = jnp.transpose(weight, (2, 1, 0))                    # (K, C_in, C_out)
    w_taps = jnp.pad(w_taps, ((0, 0), (0, 0), (0, f_pad - c_out))).astype(compute_dtype)
    b_row = jnp.pad(bias.astype(jnp.float32), (0, f_pad - c_out)).reshape(1, f_pad)

    rows_per_block = tile_words * seg_len
    rows_v = rows_per_block - (k - 1)
    grid = (n_pad // tile_words,)

    kernel = functools.partial(_cnn_kernel, seg_len=seg_len, l_out=l_out)

    bytes_accessed = int(
        x_slab.size * x_slab.dtype.itemsize
        + w_taps.size * w_taps.dtype.itemsize
        + b_row.size * 4
        + n_pad * f_pad * 4)
    cost = pl.CostEstimate(
        flops=int(2 * n_pad * l_out * c_in * k * f_pad),
        transcendentals=0,
        bytes_accessed=bytes_accessed)

    out_padded = pl.pallas_call(
        kernel,
        out_shape=jax.ShapeDtypeStruct((n_pad, f_pad), jnp.float32),
        grid=grid,
        in_specs=[
            pl.BlockSpec((rows_per_block, c_in), lambda i: (i, 0)),
            pl.BlockSpec((k, c_in, f_pad), lambda i: (0, 0, 0)),
            pl.BlockSpec((1, f_pad), lambda i: (0, 0)),
        ],
        out_specs=pl.BlockSpec((tile_words, f_pad), lambda i: (i, 0)),
        scratch_shapes=[
            pltpu.VMEM((rows_per_block, f_pad), jnp.float32),
            pltpu.VMEM((rows_v, f_pad), jnp.float32),
        ],
        compiler_params=pltpu.CompilerParams(
            dimension_semantics=("parallel",)),
        cost_estimate=cost,
    )(x_slab, w_taps, b_row)

    return out_padded[:n, :c_out]


def init_conv1d_params(key, inputs_dim, filters_num, kernel_size):
    # nn.Conv1d default init: U(-sqrt(k), sqrt(k)), k = 1/(in_channels*kernel_size).
    kw, kb = jax.random.split(key)
    bound = 1.0 / math.sqrt(inputs_dim * kernel_size)
    weight = jax.random.uniform(
        kw, (filters_num, inputs_dim, kernel_size), jnp.float32, -bound, bound)
    bias = jax.random.uniform(kb, (filters_num,), jnp.float32, -bound, bound)
    return weight, bias


def reference_forward(x, weight, bias, *, padding_size):
    conv = jax.lax.conv_general_dilated(
        x, weight, window_strides=(1,),
        padding=[(padding_size, padding_size)],
        dimension_numbers=("NCH", "OIH", "NCH"),
        precision=jax.lax.Precision.HIGHEST)
    conv = conv + bias[None, :, None]
    return jnp.max(conv, axis=-1)


if __name__ == "__main__":
    inputs_dim = 4        # C_in
    filters_num = 8       # C_out (hidden)
    kernel_size = 5
    padding_size = 1
    N = 2                 # max_sentence_length (conv batch axis)
    L = 16                # max_word_length

    key = jax.random.PRNGKey(0)
    kx, kp = jax.random.split(key)
    x = jax.random.normal(kx, (N, inputs_dim, L), jnp.float32)
    weight, bias = init_conv1d_params(kp, inputs_dim, filters_num, kernel_size)

    out = cnn_forward(x, weight, bias, padding_size=padding_size)
    out = jax.block_until_ready(out)
    assert out.shape == (N, filters_num), out.shape

    # Tight check vs a reference using the same bf16-quantized inputs.
    xq = x.astype(jnp.bfloat16).astype(jnp.float32)
    wq = weight.astype(jnp.bfloat16).astype(jnp.float32)
    refq = reference_forward(xq, wq, bias, padding_size=padding_size)
    assert jnp.allclose(out, refq, atol=1e-3, rtol=1e-3), "mismatch vs quantized ref"

    # Loose sanity check vs the full-f32 reference (bf16 input rounding only).
    ref = reference_forward(x, weight, bias, padding_size=padding_size)
    assert jnp.allclose(out, ref, atol=5e-2, rtol=5e-2), "mismatch vs f32 ref"

    print("KERNEL_OK")
</pallas_src>

<mosaic_0001>
module attributes {stable_mosaic.version = 11 : i64} {
  func.func @_cnn_kernel(%arg0: i32, %arg1: memref<192x4xbf16, #tpu.memory_space<vmem>>, %arg2: memref<5x4x128xbf16, #tpu.memory_space<vmem>>, %arg3: memref<1x128xf32, #tpu.memory_space<vmem>>, %arg4: memref<8x128xf32, #tpu.memory_space<vmem>>, %arg5: memref<192x128xf32, #tpu.memory_space<vmem>>, %arg6: memref<188x128xf32, #tpu.memory_space<vmem>>) attributes {dimension_semantics = [#tpu.dimension_semantics<parallel>], iteration_bounds = array<i64: 1>, scalar_prefetch = 0 : i64, scratch_operands = 2 : i64, tpu.core_type = #tpu.core_type<tc>, window_params = [{transform_indices = @transform_0, window_bounds = array<i64: 192, 4>}, {pipeline_mode = #tpu.pipeline_mode<synchronous>, transform_indices = @transform_1, window_bounds = array<i64: 5, 4, 128>}, {pipeline_mode = #tpu.pipeline_mode<synchronous>, transform_indices = @transform_2, window_bounds = array<i64: 1, 128>}, {transform_indices = @transform_3, window_bounds = array<i64: 8, 128>}]} {
    %c0 = arith.constant 0 : index
    %c0_0 = arith.constant 0 : index
    %0 = vector.load %arg1[%c0, %c0_0] : memref<192x4xbf16, #tpu.memory_space<vmem>>, vector<192x4xbf16>
    %c0_1 = arith.constant 0 : index
    %c0_2 = arith.constant 0 : index
    %c0_3 = arith.constant 0 : index
    %1 = vector.load %arg2[%c0_1, %c0_2, %c0_3] : memref<5x4x128xbf16, #tpu.memory_space<vmem>>, vector<1x4x128xbf16>
    %2 = vector.shape_cast %1 : vector<1x4x128xbf16> to vector<4x128xbf16>
    %cst = arith.constant dense<0.000000e+00> : vector<192x128xf32>
    %3 = tpu.matmul %0, %2, %cst {dimension_numbers = #tpu.dot_dimension_numbers<[1], [0], [0], [1], [0, 0, 1, 1], [], []>} : vector<192x4xbf16>, vector<4x128xbf16>, vector<192x128xf32> -> vector<192x128xf32>
    %c0_4 = arith.constant 0 : index
    %c0_5 = arith.constant 0 : index
    %4 = vector.load %arg5[%c0_4, %c0_5] : memref<192x128xf32, #tpu.memory_space<vmem>>, vector<192x128xf32>
    tpu.vector_store %arg5[%c0_4, %c0_5], %3 {strides = array<i32>} : memref<192x128xf32, #tpu.memory_space<vmem>>, vector<192x128xf32>,
    %c0_6 = arith.constant 0 : index
    %c0_7 = arith.constant 0 : index
    %5 = vector.load %arg5[%c0_6, %c0_7] : memref<192x128xf32, #tpu.memory_space<vmem>>, vector<188x128xf32>
    %c0_8 = arith.constant 0 : index
    %c0_9 = arith.constant 0 : index
    %6 = vector.load %arg6[%c0_8, %c0_9] : memref<188x128xf32, #tpu.memory_space<vmem>>, vector<188x128xf32>
    tpu.vector_store %arg6[%c0_8, %c0_9], %5 {strides = array<i32>} : memref<188x128xf32, #tpu.memory_space<vmem>>, vector<188x128xf32>,
    %c1 = arith.constant 1 : index
    %c0_10 = arith.constant 0 : index
    %c0_11 = arith.constant 0 : index
    %7 = vector.load %arg2[%c1, %c0_10, %c0_11] : memref<5x4x128xbf16, #tpu.memory_space<vmem>>, vector<1x4x128xbf16>
    %8 = vector.shape_cast %7 : vector<1x4x128xbf16> to vector<4x128xbf16>
    %cst_12 = arith.constant dense<0.000000e+00> : vector<192x128xf32>
    %9 = tpu.matmul %0, %8, %cst_12 {dimension_numbers = #tpu.dot_dimension_numbers<[1], [0], [0], [1], [0, 0, 1, 1], [], []>} : vector<192x4xbf16>, vector<4x128xbf16>, vector<192x128xf32> -> vector<192x128xf32>
    %c0_13 = arith.constant 0 : index
    %c0_14 = arith.constant 0 : index
    %10 = vector.load %arg5[%c0_13, %c0_14] : memref<192x128xf32, #tpu.memory_space<vmem>>, vector<192x128xf32>
    tpu.vector_store %arg5[%c0_13, %c0_14], %9 {strides = array<i32>} : memref<192x128xf32, #tpu.memory_space<vmem>>, vector<192x128xf32>,
    %c1_15 = arith.constant 1 : index
    %c0_16 = arith.constant 0 : index
    %11 = vector.load %arg5[%c1_15, %c0_16] : memref<192x128xf32, #tpu.memory_space<vmem>>, vector<188x128xf32>
    %c0_17 = arith.constant 0 : index
    %c0_18 = arith.constant 0 : index
    %12 = vector.load %arg6[%c0_17, %c0_18] : memref<188x128xf32, #tpu.memory_space<vmem>>, vector<188x128xf32>
    %13 = arith.addf %12, %11 : vector<188x128xf32>
    %c0_19 = arith.constant 0 : index
    %c0_20 = arith.constant 0 : index
    %14 = vector.load %arg6[%c0_19, %c0_20] : memref<188x128xf32, #tpu.memory_space<vmem>>, vector<188x128xf32>
    tpu.vector_store %arg6[%c0_19, %c0_20], %13 {strides = array<i32>} : memref<188x128xf32, #tpu.memory_space<vmem>>, vector<188x128xf32>,
    %c2 = arith.constant 2 : index
    %c0_21 = arith.constant 0 : index
    %c0_22 = arith.constant 0 : index
    %15 = vector.load %arg2[%c2, %c0_21, %c0_22] : memref<5x4x128xbf16, #tpu.memory_space<vmem>>, vector<1x4x128xbf16>
    %16 = vector.shape_cast %15 : vector<1x4x128xbf16> to vector<4x128xbf16>
    %cst_23 = arith.constant dense<0.000000e+00> : vector<192x128xf32>
    %17 = tpu.matmul %0, %16, %cst_23 {dimension_numbers = #tpu.dot_dimension_numbers<[1], [0], [0], [1], [0, 0, 1, 1], [], []>} : vector<192x4xbf16>, vector<4x128xbf16>, vector<192x128xf32> -> vector<192x128xf32>
    %c0_24 = arith.constant 0 : index
    %c0_25 = arith.constant 0 : index
    %18 = vector.load %arg5[%c0_24, %c0_25] : memref<192x128xf32, #tpu.memory_space<vmem>>, vector<192x128xf32>
    tpu.vector_store %arg5[%c0_24, %c0_25], %17 {strides = array<i32>} : memref<192x128xf32, #tpu.memory_space<vmem>>, vector<192x128xf32>,
    %c2_26 = arith.constant 2 : index
    %c0_27 = arith.constant 0 : index
    %19 = vector.load %arg5[%c2_26, %c0_27] : memref<192x128xf32, #tpu.memory_space<vmem>>, vector<188x128xf32>
    %c0_28 = arith.constant 0 : index
    %c0_29 = arith.constant 0 : index
    %20 = vector.load %arg6[%c0_28, %c0_29] : memref<188x128xf32, #tpu.memory_space<vmem>>, vector<188x128xf32>
    %21 = arith.addf %20, %19 : vector<188x128xf32>
    %c0_30 = arith.constant 0 : index
    %c0_31 = arith.constant 0 : index
    %22 = vector.load %arg6[%c0_30, %c0_31] : memref<188x128xf32, #tpu.memory_space<vmem>>, vector<188x128xf32>
    tpu.vector_store %arg6[%c0_30, %c0_31], %21 {strides = array<i32>} : memref<188x128xf32, #tpu.memory_space<vmem>>, vector<188x128xf32>,
    %c3 = arith.constant 3 : index
    %c0_32 = arith.constant 0 : index
    %c0_33 = arith.constant 0 : index
    %23 = vector.load %arg2[%c3, %c0_32, %c0_33] : memref<5x4x128xbf16, #tpu.memory_space<vmem>>, vector<1x4x128xbf16>
    %24 = vector.shape_cast %23 : vector<1x4x128xbf16> to vector<4x128xbf16>
    %cst_34 = arith.constant dense<0.000000e+00> : vector<192x128xf32>
    %25 = tpu.matmul %0, %24, %cst_34 {dimension_numbers = #tpu.dot_dimension_numbers<[1], [0], [0], [1], [0, 0, 1, 1], [], []>} : vector<192x4xbf16>, vector<4x128xbf16>, vector<192x128xf32> -> vector<192x128xf32>
    %c0_35 = arith.constant 0 : index
    %c0_36 = arith.constant 0 : index
    %26 = vector.load %arg5[%c0_35, %c0_36] : memref<192x128xf32, #tpu.memory_space<vmem>>, vector<192x128xf32>
    tpu.vector_store %arg5[%c0_35, %c0_36], %25 {strides = array<i32>} : memref<192x128xf32, #tpu.memory_space<vmem>>, vector<192x128xf32>,
    %c3_37 = arith.constant 3 : index
    %c0_38 = arith.constant 0 : index
    %27 = vector.load %arg5[%c3_37, %c0_38] : memref<192x128xf32, #tpu.memory_space<vmem>>, vector<188x128xf32>
    %c0_39 = arith.constant 0 : index
    %c0_40 = arith.constant 0 : index
    %28 = vector.load %arg6[%c0_39, %c0_40] : memref<188x128xf32, #tpu.memory_space<vmem>>, vector<188x128xf32>
    %29 = arith.addf %28, %27 : vector<188x128xf32>
    %c0_41 = arith.constant 0 : index
    %c0_42 = arith.constant 0 : index
    %30 = vector.load %arg6[%c0_41, %c0_42] : memref<188x128xf32, #tpu.memory_space<vmem>>, vector<188x128xf32>
    tpu.vector_store %arg6[%c0_41, %c0_42], %29 {strides = array<i32>} : memref<188x128xf32, #tpu.memory_space<vmem>>, vector<188x128xf32>,
    %c4 = arith.constant 4 : index
    %c0_43 = arith.constant 0 : index
    %c0_44 = arith.constant 0 : index
    %31 = vector.load %arg2[%c4, %c0_43, %c0_44] : memref<5x4x128xbf16, #tpu.memory_space<vmem>>, vector<1x4x128xbf16>
    %32 = vector.shape_cast %31 : vector<1x4x128xbf16> to vector<4x128xbf16>
    %cst_45 = arith.constant dense<0.000000e+00> : vector<192x128xf32>
    %33 = tpu.matmul %0, %32, %cst_45 {dimension_numbers = #tpu.dot_dimension_numbers<[1], [0], [0], [1], [0, 0, 1, 1], [], []>} : vector<192x4xbf16>, vector<4x128xbf16>, vector<192x128xf32> -> vector<192x128xf32>
    %c0_46 = arith.constant 0 : index
    %c0_47 = arith.constant 0 : index
    %34 = vector.load %arg5[%c0_46, %c0_47] : memref<192x128xf32, #tpu.memory_space<vmem>>, vector<192x128xf32>
    tpu.vector_store %arg5[%c0_46, %c0_47], %33 {strides = array<i32>} : memref<192x128xf32, #tpu.memory_space<vmem>>, vector<192x128xf32>,
    %c4_48 = arith.constant 4 : index
    %c0_49 = arith.constant 0 : index
    %35 = vector.load %arg5[%c4_48, %c0_49] : memref<192x128xf32, #tpu.memory_space<vmem>>, vector<188x128xf32>
    %c0_50 = arith.constant 0 : index
    %c0_51 = arith.constant 0 : index
    %36 = vector.load %arg6[%c0_50, %c0_51] : memref<188x128xf32, #tpu.memory_space<vmem>>, vector<188x128xf32>
    %37 = arith.addf %36, %35 : vector<188x128xf32>
    %c0_52 = arith.constant 0 : index
    %c0_53 = arith.constant 0 : index
    %38 = vector.load %arg6[%c0_52, %c0_53] : memref<188x128xf32, #tpu.memory_space<vmem>>, vector<188x128xf32>
    tpu.vector_store %arg6[%c0_52, %c0_53], %37 {strides = array<i32>} : memref<188x128xf32, #tpu.memory_space<vmem>>, vector<188x128xf32>,
    %c0_54 = arith.constant 0 : index
    %c0_55 = arith.constant 0 : index
    %39 = vector.load %arg3[%c0_54, %c0_55] : memref<1x128xf32, #tpu.memory_space<vmem>>, vector<1x128xf32>
    %c0_56 = arith.constant 0 : index
    %c0_57 = arith.constant 0 : index
    %40 = vector.load %arg6[%c0_56, %c0_57] : memref<188x128xf32, #tpu.memory_space<vmem>>, vector<14x128xf32>
    %cst_58 = arith.constant dense<0xFF800000> : vector<128xf32>
    %41 = vector.multi_reduction <maximumf>, %40, %cst_58 [0] : vector<14x128xf32> to vector<128xf32>
    %42 = vector.shape_cast %41 : vector<128xf32> to vector<1x128xf32>
    %43 = arith.addf %42, %39 : vector<1x128xf32>
    %c0_59 = arith.constant 0 : index
    %c0_60 = arith.constant 0 : index
    %44 = vector.load %arg4[%c0_59, %c0_60] : memref<8x128xf32, #tpu.memory_space<vmem>>, vector<1x128xf32>
    tpu.vector_store %arg4[%c0_59, %c0_60], %43 {strides = array<i32>} : memref<8x128xf32, #tpu.memory_space<vmem>>, vector<1x128xf32>,
    %c24 = arith.constant 24 : index
    %c0_61 = arith.constant 0 : index
    %45 = vector.load %arg6[%c24, %c0_61] : memref<188x128xf32, #tpu.memory_space<vmem>>, vector<14x128xf32>
    %cst_62 = arith.constant dense<0xFF800000> : vector<128xf32>
    %46 = vector.multi_reduction <maximumf>, %45, %cst_62 [0] : vector<14x128xf32> to vector<128xf32>
    %47 = vector.shape_cast %46 : vector<128xf32> to vector<1x128xf32>
    %48 = arith.addf %47, %39 : vector<1x128xf32>
    %c1_63 = arith.constant 1 : index
    %c0_64 = arith.constant 0 : index
    %49 = vector.load %arg4[%c1_63, %c0_64] : memref<8x128xf32, #tpu.memory_space<vmem>>, vector<1x128xf32>
    tpu.vector_store %arg4[%c1_63, %c0_64], %48 {strides = array<i32>} : memref<8x128xf32, #tpu.memory_space<vmem>>, vector<1x128xf32>,
    %c48 = arith.constant 48 : index
    %c0_65 = arith.constant 0 : index
    %50 = vector.load %arg6[%c48, %c0_65] : memref<188x128xf32, #tpu.memory_space<vmem>>, vector<14x128xf32>
    %cst_66 = arith.constant dense<0xFF800000> : vector<128xf32>
    %51 = vector.multi_reduction <maximumf>, %50, %cst_66 [0] : vector<14x128xf32> to vector<128xf32>
    %52 = vector.shape_cast %51 : vector<128xf32> to vector<1x128xf32>
    %53 = arith.addf %52, %39 : vector<1x128xf32>
    %c2_67 = arith.constant 2 : index
    %c0_68 = arith.constant 0 : index
    %54 = vector.load %arg4[%c2_67, %c0_68] : memref<8x128xf32, #tpu.memory_space<vmem>>, vector<1x128xf32>
    tpu.vector_store %arg4[%c2_67, %c0_68], %53 {strides = array<i32>} : memref<8x128xf32, #tpu.memory_space<vmem>>, vector<1x128xf32>,
    %c72 = arith.constant 72 : index
    %c0_69 = arith.constant 0 : index
    %55 = vector.load %arg6[%c72, %c0_69] : memref<188x128xf32, #tpu.memory_space<vmem>>, vector<14x128xf32>
    %cst_70 = arith.constant dense<0xFF800000> : vector<128xf32>
    %56 = vector.multi_reduction <maximumf>, %55, %cst_70 [0] : vector<14x128xf32> to vector<128xf32>
    %57 = vector.shape_cast %56 : vector<128xf32> to vector<1x128xf32>
    %58 = arith.addf %57, %39 : vector<1x128xf32>
    %c3_71 = arith.constant 3 : index
    %c0_72 = arith.constant 0 : index
    %59 = vector.load %arg4[%c3_71, %c0_72] : memref<8x128xf32, #tpu.memory_space<vmem>>, vector<1x128xf32>
    tpu.vector_store %arg4[%c3_71, %c0_72], %58 {strides = array<i32>} : memref<8x128xf32, #tpu.memory_space<vmem>>, vector<1x128xf32>,
    %c96 = arith.constant 96 : index
    %c0_73 = arith.constant 0 : index
    %60 = vector.load %arg6[%c96, %c0_73] : memref<188x128xf32, #tpu.memory_space<vmem>>, vector<14x128xf32>
    %cst_74 = arith.constant dense<0xFF800000> : vector<128xf32>
    %61 = vector.multi_reduction <maximumf>, %60, %cst_74 [0] : vector<14x128xf32> to vector<128xf32>
    %62 = vector.shape_cast %61 : vector<128xf32> to vector<1x128xf32>
    %63 = arith.addf %62, %39 : vector<1x128xf32>
    %c4_75 = arith.constant 4 : index
    %c0_76 = arith.constant 0 : index
    %64 = vector.load %arg4[%c4_75, %c0_76] : memref<8x128xf32, #tpu.memory_space<vmem>>, vector<1x128xf32>
    tpu.vector_store %arg4[%c4_75, %c0_76], %63 {strides = array<i32>} : memref<8x128xf32, #tpu.memory_space<vmem>>, vector<1x128xf32>,
    %c120 = arith.constant 120 : index
    %c0_77 = arith.constant 0 : index
    %65 = vector.load %arg6[%c120, %c0_77] : memref<188x128xf32, #tpu.memory_space<vmem>>, vector<14x128xf32>
    %cst_78 = arith.constant dense<0xFF800000> : vector<128xf32>
    %66 = vector.multi_reduction <maximumf>, %65, %cst_78 [0] : vector<14x128xf32> to vector<128xf32>
    %67 = vector.shape_cast %66 : vector<128xf32> to vector<1x128xf32>
    %68 = arith.addf %67, %39 : vector<1x128xf32>
    %c5 = arith.constant 5 : index
    %c0_79 = arith.constant 0 : index
    %69 = vector.load %arg4[%c5, %c0_79] : memref<8x128xf32, #tpu.memory_space<vmem>>, vector<1x128xf32>
    tpu.vector_store %arg4[%c5, %c0_79], %68 {strides = array<i32>} : memref<8x128xf32, #tpu.memory_space<vmem>>, vector<1x128xf32>,
    %c144 = arith.constant 144 : index
    %c0_80 = arith.constant 0 : index
    %70 = vector.load %arg6[%c144, %c0_80] : memref<188x128xf32, #tpu.memory_space<vmem>>, vector<14x128xf32>
    %cst_81 = arith.constant dense<0xFF800000> : vector<128xf32>
    %71 = vector.multi_reduction <maximumf>, %70, %cst_81 [0] : vector<14x128xf32> to vector<128xf32>
    %72 = vector.shape_cast %71 : vector<128xf32> to vector<1x128xf32>
    %73 = arith.addf %72, %39 : vector<1x128xf32>
    %c6 = arith.constant 6 : index
    %c0_82 = arith.constant 0 : index
    %74 = vector.load %arg4[%c6, %c0_82] : memref<8x128xf32, #tpu.memory_space<vmem>>, vector<1x128xf32>
    tpu.vector_store %arg4[%c6, %c0_82], %73 {strides = array<i32>} : memref<8x128xf32, #tpu.memory_space<vmem>>, vector<1x128xf32>,
    %c168 = arith.constant 168 : index
    %c0_83 = arith.constant 0 : index
    %75 = vector.load %arg6[%c168, %c0_83] : memref<188x128xf32, #tpu.memory_space<vmem>>, vector<14x128xf32>
    %cst_84 = arith.constant dense<0xFF800000> : vector<128xf32>
    %76 = vector.multi_reduction <maximumf>, %75, %cst_84 [0] : vector<14x128xf32> to vector<128xf32>
    %77 = vector.shape_cast %76 : vector<128xf32> to vector<1x128xf32>
    %78 = arith.addf %77, %39 : vector<1x128xf32>
    %c7 = arith.constant 7 : index
    %c0_85 = arith.constant 0 : index
    %79 = vector.load %arg4[%c7, %c0_85] : memref<8x128xf32, #tpu.memory_space<vmem>>, vector<1x128xf32>
    tpu.vector_store %arg4[%c7, %c0_85], %78 {strides = array<i32>} : memref<8x128xf32, #tpu.memory_space<vmem>>, vector<1x128xf32>,
    return
  }
  func.func @transform_0(%arg0: i32) -> (i32, i32) {
    %c0_i32 = arith.constant 0 : i32
    %c0_i32_0 = arith.constant 0 : i32
    return %arg0, %c0_i32 : i32, i32
  }
  func.func @transform_1(%arg0: i32) -> (i32, i32, i32) {
    %c0_i32 = arith.constant 0 : i32
    %c0_i32_0 = arith.constant 0 : i32
    %c0_i32_1 = arith.constant 0 : i32
    %c0_i32_2 = arith.constant 0 : i32
    return %c0_i32, %c0_i32_0, %c0_i32_1 : i32, i32, i32
  }
  func.func @transform_2(%arg0: i32) -> (i32, i32) {
    %c0_i32 = arith.constant 0 : i32
    %c0_i32_0 = arith.constant 0 : i32
    %c0_i32_1 = arith.constant 0 : i32
    return %c0_i32, %c0_i32_0 : i32, i32
  }
  func.func @transform_3(%arg0: i32) -> (i32, i32) {
    %c0_i32 = arith.constant 0 : i32
    %c0_i32_0 = arith.constant 0 : i32
    return %arg0, %c0_i32 : i32, i32
  }
}

</mosaic_0001>

<llo_original>
// kernel: tpu_custom_call.1
$region0: #{tpu_custom_call.1}
  #allocation0 [shape = 'u32[]', space=smem, size = 0x4, offset = 0x4, fixed_abs, tag = 'smem constant byte address 0x4 - core index']
  #allocation1 [shape = 'u32[144,128]{1,0:T(1,128)}', space=vmem, size = 0x12000, scoped, tag = 'internal scratch']
  #allocation2 [shape = 'f32[192,128]{1,0:T(8,128)}', space=vmem, size = 0x18000, scoped, tag = 'scratch operand']
  #allocation3 [shape = 'f32[188,128]{1,0:T(8,128)}', space=vmem, size = 0x18000, scoped, tag = 'scratch operand']
  %s0 = inlined_call_operand.vmem [shape: bf16[192,4], index: 0, kind: input, shape index: {}]
  %s1 = inlined_call_operand.vmem [shape: bf16[5,4,128], index: 1, kind: input, shape index: {}]
  %s2 = inlined_call_operand.vmem [shape: f32[1,128], index: 2, kind: input, shape index: {}]
  %s3 = inlined_call_operand.hbm [shape: f32[8,128], index: 3, kind: output, shape index: {}]
  %s4 = sld [smem:[#allocation0]]
  $region22: #{tpu_custom_call.1} parent=0
    _
  %s6 = ssub.s32 1, %s4
  %s7 = scalar_select 0, %s6, %s4
  $region1: #{tpu_custom_call.1} parent=0
    #allocation4 [shape = 'u8[4096]{0}', space=vmem, size = 0x1000, scoped, tag = 'output window, operand 0, single buffered']
    #allocation5 [shape = 's32[1]{0}', space=sflag, size = 0x4, scoped, tag = 'scoped memory for tpu_custom_call.1']
    %8 = vsyncpa [#allocation5], 0
    // Predicated region
    $region2: #{tpu_custom_call.1} parent=1 // pred_check
      _
    $region3: #{tpu_custom_call.1} parent=1 // pred_check_branch
      %10 = sbr.rel (0) target = $region5
    $region4: #{tpu_custom_call.1} parent=1 // pred_region
      _
    $region5: #{tpu_custom_call.1} parent=1 // pred_fallthru
      _
    // Predicated region
    $region6: #{tpu_custom_call.1} parent=1 // pred_check
      _
    $region7: #{tpu_custom_call.1} parent=1 // pred_check_branch
      %12 = sbr.rel (0) target = $region9
    $region8: #{tpu_custom_call.1} parent=1 // pred_region
      _
    $region9: #{tpu_custom_call.1} parent=1 // pred_fallthru
      _
    // Predicated region
    $region10: #{tpu_custom_call.1} parent=1 // pred_check
      _
    $region11: #{tpu_custom_call.1} parent=1 // pred_check_branch
      %14 = sbr.rel (0) target = $region13
    $region12: #{tpu_custom_call.1} parent=1 // pred_region
      _
    $region13: #{tpu_custom_call.1} parent=1 // pred_fallthru
      _
    %v16 = vld [vmem:[%s0] sm:$0xf]
    %v17 = vld [vmem:[%s0 + $0x4] sm:$0xf]
    %v18 = vld [vmem:[%s0 + $0x8] sm:$0xf]
    %v19 = vld [vmem:[%s0 + $0xc] sm:$0xf]
    %v20 = vld [vmem:[%s0 + $0x10] sm:$0xf]
    %v21 = vld [vmem:[%s0 + $0x14] sm:$0xf]
    %v22 = vld [vmem:[%s0 + $0x18] sm:$0xf]
    %v23 = vld [vmem:[%s0 + $0x1c] sm:$0xf]
    %v24 = vld [vmem:[%s0 + $0x20] sm:$0xf]
    %v25 = vld [vmem:[%s0 + $0x24] sm:$0xf]
    %v26 = vld [vmem:[%s0 + $0x28] sm:$0xf]
    %v27 = vld [vmem:[%s0 + $0x2c] sm:$0xf]
    %v28 = vld [vmem:[%s0 + $0x30] sm:$0xf]
    %v29 = vld [vmem:[%s0 + $0x34] sm:$0xf]
    %v30 = vld [vmem:[%s0 + $0x38] sm:$0xf]
    %v31 = vld [vmem:[%s0 + $0x3c] sm:$0xf]
    %v32 = vld [vmem:[%s0 + $0x40] sm:$0xf]
    %v33 = vld [vmem:[%s0 + $0x44] sm:$0xf]
    %v34 = vld [vmem:[%s0 + $0x48] sm:$0xf]
    %v35 = vld [vmem:[%s0 + $0x4c] sm:$0xf]
    %v36 = vld [vmem:[%s0 + $0x50] sm:$0xf]
    %v37 = vld [vmem:[%s0 + $0x54] sm:$0xf]
    %v38 = vld [vmem:[%s0 + $0x58] sm:$0xf]
    %v39 = vld [vmem:[%s0 + $0x5c] sm:$0xf]
    %v40 = vld [vmem:[%s1] sm:$0x3]
    %v65 = vunpack.c.l.b16 %v16
    %v66 = vunpack.c.l.b16 %v17
    %v67 = vunpack.c.l.b16 %v18
    %v68 = vunpack.c.l.b16 %v19
    %v69 = vunpack.c.l.b16 %v20
    %v70 = vunpack.c.l.b16 %v21
    %v71 = vunpack.c.l.b16 %v22
    %v72 = vunpack.c.l.b16 %v23
    %v73 = vunpack.c.l.b16 %v24
    %v74 = vunpack.c.l.b16 %v25
    %v75 = vunpack.c.l.b16 %v26
    %v76 = vunpack.c.l.b16 %v27
    %v77 = vunpack.c.l.b16 %v28
    %v78 = vunpack.c.l.b16 %v29
    %v79 = vunpack.c.l.b16 %v30
    %v80 = vunpack.c.l.b16 %v31
    %v81 = vunpack.c.l.b16 %v32
    %v82 = vunpack.c.l.b16 %v33
    %v83 = vunpack.c.l.b16 %v34
    %v84 = vunpack.c.l.b16 %v35
    %v85 = vunpack.c.l.b16 %v36
    %v86 = vunpack.c.l.b16 %v37
    %v87 = vunpack.c.l.b16 %v38
    %v88 = vunpack.c.l.b16 %v39
    %v89 = vpack.c.b16 %v66, %v65
    %v90 = vpack.c.b16 %v68, %v67
    %v91 = vpack.c.b16 %v70, %v69
    %v92 = vpack.c.b16 %v72, %v71
    %v93 = vpack.c.b16 %v74, %v73
    %v94 = vpack.c.b16 %v76, %v75
    %v95 = vpack.c.b16 %v78, %v77
    %v96 = vpack.c.b16 %v80, %v79
    %v97 = vpack.c.b16 %v82, %v81
    %v98 = vpack.c.b16 %v84, %v83
    %v99 = vpack.c.b16 %v86, %v85
    %v100 = vpack.c.b16 %v88, %v87
    %vm101 = vcmask 31744
    %v103 = vsel %vm101, %v89, 0
    %v106 = vsel %vm101, %v90, 0
    %v109 = vsel %vm101, %v91, 0
    %v112 = vsel %vm101, %v92, 0
    %v115 = vsel %vm101, %v93, 0
    %v118 = vsel %vm101, %v94, 0
    %v121 = vsel %vm101, %v95, 0
    %v124 = vsel %vm101, %v96, 0
    %v127 = vsel %vm101, %v97, 0
    %v130 = vsel %vm101, %v98, 0
    %v133 = vsel %vm101, %v99, 0
    %v136 = vsel %vm101, %v100, 0
    %vm138 = vcmask 1041408
    %v140 = vsel %vm138, %v40, 0
    %142 = vmatprep.subr.bf16.mxu0 0
    %143 = vmatpush1.bf16.msra.mxu0 0
    %144 = vmatprep.subr.bf16.mxu0 0
    %145 = vmatpush1.bf16.msra.mxu0 0
    %146 = vmatprep.subr.bf16.mxu0 0
    %147 = vmatpush1.bf16.msra.mxu0 0
    %148 = vmatprep.subr.bf16.mxu0 0
    %149 = vmatpush1.bf16.msra.mxu0 0
    %150 = vmatprep.subr.bf16.mxu0 0
    %151 = vmatpush1.bf16.msra.mxu0 0
    %152 = vmatprep.subr.bf16.mxu0 0
    %153 = vmatpush1.bf16.msra.mxu0 0
    %154 = vmatprep.subr.bf16.mxu0 0
    %155 = vmatpush1.bf16.msra.mxu0 0
    %156 = vmatprep.subr.bf16.mxu0 0
    %157 = vmatpush1.bf16.msra.mxu0 %v140
    %158 = vmatprep.subr.bf16.mxu0 0
    %159 = vmatpush2.bf16.msra.mxu0 0
    %160 = vmatprep.subr.bf16.mxu0 0
    %161 = vmatpush2.bf16.msra.mxu0 0
    %162 = vmatprep.subr.bf16.mxu0 0
    %163 = vmatpush2.bf16.msra.mxu0 0
    %164 = vmatprep.subr.bf16.mxu0 0
    %165 = vmatpush2.bf16.msra.mxu0 0
    %166 = vmatprep.subr.bf16.mxu0 0
    %167 = vmatpush2.bf16.msra.mxu0 0
    %168 = vmatprep.subr.bf16.mxu0 0
    %169 = vmatpush2.bf16.msra.mxu0 0
    %170 = vmatprep.subr.bf16.mxu0 0
    %171 = vmatpush2.bf16.msra.mxu0 0
    %172 = vmatprep.subr.bf16.mxu0 0
    %173 = vmatpush2.bf16.msra.mxu0 0
    %174 = vmatprep.mubr.bf16.mxu0 0
    %175 = vmatmul.mubr.bf16.gmra.mxu0 %v103
    %v176 = vpop.f32.mrf.mxu0
    %v177 = vadd.f32 0.0, %v176
    %v178 = vpop.f32.mrf.mxu0
    %v179 = vpop.f32.mrf.mxu0
    %v180 = vadd.f32 0.0, %v179
    %v181 = vpop.f32.mrf.mxu0
    %182 = vmatprep.mubr.bf16.mxu0 0
    %183 = vmatmul.mubr.bf16.gmra.mxu0 %v106
    %v184 = vpop.f32.mrf.mxu0
    %v185 = vadd.f32 0.0, %v184
    %v186 = vpop.f32.mrf.mxu0
    %v187 = vpop.f32.mrf.mxu0
    %v188 = vadd.f32 0.0, %v187
    %v189 = vpop.f32.mrf.mxu0
    %190 = vmatprep.mubr.bf16.mxu0 0
    %191 = vmatmul.mubr.bf16.gmra.mxu0 %v109
    %v192 = vpop.f32.mrf.mxu0
    %v193 = vadd.f32 0.0, %v192
    %v194 = vpop.f32.mrf.mxu0
    %v195 = vpop.f32.mrf.mxu0
    %v196 = vadd.f32 0.0, %v195
    %v197 = vpop.f32.mrf.mxu0
    %198 = vmatprep.mubr.bf16.mxu0 0
    %199 = vmatmul.mubr.bf16.gmra.mxu0 %v112
    %v200 = vpop.f32.mrf.mxu0
    %v201 = vadd.f32 0.0, %v200
    %v202 = vpop.f32.mrf.mxu0
    %v203 = vpop.f32.mrf.mxu0
    %v204 = vadd.f32 0.0, %v203
    %v205 = vpop.f32.mrf.mxu0
    %206 = vmatprep.mubr.bf16.mxu0 0
    %207 = vmatmul.mubr.bf16.gmra.mxu0 %v115
    %v208 = vpop.f32.mrf.mxu0
    %v209 = vadd.f32 0.0, %v208
    %v210 = vpop.f32.mrf.mxu0
    %v211 = vpop.f32.mrf.mxu0
    %v212 = vadd.f32 0.0, %v211
    %v213 = vpop.f32.mrf.mxu0
    %214 = vmatprep.mubr.bf16.mxu0 0
    %215 = vmatmul.mubr.bf16.gmra.mxu0 %v118
    %v216 = vpop.f32.mrf.mxu0
    %v217 = vadd.f32 0.0, %v216
    %v218 = vpop.f32.mrf.mxu0
    %v219 = vpop.f32.mrf.mxu0
    %v220 = vadd.f32 0.0, %v219
    %v221 = vpop.f32.mrf.mxu0
    %222 = vmatprep.mubr.bf16.mxu0 0
    %223 = vmatmul.mubr.bf16.gmra.mxu0 %v121
    %v224 = vpop.f32.mrf.mxu0
    %v225 = vadd.f32 0.0, %v224
    %v226 = vpop.f32.mrf.mxu0
    %v227 = vpop.f32.mrf.mxu0
    %v228 = vadd.f32 0.0, %v227
    %v229 = vpop.f32.mrf.mxu0
    %230 = vmatprep.mubr.bf16.mxu0 0
    %231 = vmatmul.mubr.bf16.gmra.mxu0 %v124
    %v232 = vpop.f32.mrf.mxu0
    %v233 = vadd.f32 0.0, %v232
    %v234 = vpop.f32.mrf.mxu0
    %v235 = vpop.f32.mrf.mxu0
    %v236 = vadd.f32 0.0, %v235
    %v237 = vpop.f32.mrf.mxu0
    %238 = vmatprep.mubr.bf16.mxu0 0
    %239 = vmatmul.mubr.bf16.gmra.mxu0 %v127
    %v240 = vpop.f32.mrf.mxu0
    %v241 = vadd.f32 0.0, %v240
    %v242 = vpop.f32.mrf.mxu0
    %v243 = vpop.f32.mrf.mxu0
    %v244 = vadd.f32 0.0, %v243
    %v245 = vpop.f32.mrf.mxu0
    %246 = vmatprep.mubr.bf16.mxu0 0
    %247 = vmatmul.mubr.bf16.gmra.mxu0 %v130
    %v248 = vpop.f32.mrf.mxu0
    %v249 = vadd.f32 0.0, %v248
    %v250 = vpop.f32.mrf.mxu0
    %v251 = vpop.f32.mrf.mxu0
    %v252 = vadd.f32 0.0, %v251
    %v253 = vpop.f32.mrf.mxu0
    %254 = vmatprep.mubr.bf16.mxu0 0
    %255 = vmatmul.mubr.bf16.gmra.mxu0 %v133
    %v256 = vpop.f32.mrf.mxu0
    %v257 = vadd.f32 0.0, %v256
    %v258 = vpop.f32.mrf.mxu0
    %v259 = vpop.f32.mrf.mxu0
    %v260 = vadd.f32 0.0, %v259
    %v261 = vpop.f32.mrf.mxu0
    %262 = vmatprep.mubr.bf16.mxu0 0
    %263 = vmatmul.mubr.bf16.gmra.mxu0 %v136
    %v264 = vpop.f32.mrf.mxu0
    %v265 = vadd.f32 0.0, %v264
    %v266 = vpop.f32.mrf.mxu0
    %v267 = vpop.f32.mrf.mxu0
    %v268 = vadd.f32 0.0, %v267
    %v269 = vpop.f32.mrf.mxu0
    %270 = vdwg.mxu0
    %271 = vst [vmem:[#allocation2] sm:$0xff] %v177
    %272 = vst [vmem:[#allocation2 + $0x8] sm:$0xff] %v180
    %273 = vst [vmem:[#allocation2 + $0x10] sm:$0xff] %v185
    %274 = vst [vmem:[#allocation2 + $0x18] sm:$0xff] %v188
    %275 = vst [vmem:[#allocation2 + $0x20] sm:$0xff] %v193
    %276 = vst [vmem:[#allocation2 + $0x28] sm:$0xff] %v196
    %277 = vst [vmem:[#allocation2 + $0x30] sm:$0xff] %v201
    %278 = vst [vmem:[#allocation2 + $0x38] sm:$0xff] %v204
    %279 = vst [vmem:[#allocation2 + $0x40] sm:$0xff] %v209
    %280 = vst [vmem:[#allocation2 + $0x48] sm:$0xff] %v212
    %281 = vst [vmem:[#allocation2 + $0x50] sm:$0xff] %v217
    %282 = vst [vmem:[#allocation2 + $0x58] sm:$0xff] %v220
    %283 = vst [vmem:[#allocation2 + $0x60] sm:$0xff] %v225
    %284 = vst [vmem:[#allocation2 + $0x68] sm:$0xff] %v228
    %285 = vst [vmem:[#allocation2 + $0x70] sm:$0xff] %v233
    %286 = vst [vmem:[#allocation2 + $0x78] sm:$0xff] %v236
    %287 = vst [vmem:[#allocation2 + $0x80] sm:$0xff] %v241
    %288 = vst [vmem:[#allocation2 + $0x88] sm:$0xff] %v244
    %289 = vst [vmem:[#allocation2 + $0x90] sm:$0xff] %v249
    %290 = vst [vmem:[#allocation2 + $0x98] sm:$0xff] %v252
    %291 = vst [vmem:[#allocation2 + $0xa0] sm:$0xff] %v257
    %292 = vst [vmem:[#allocation2 + $0xa8] sm:$0xff] %v260
    %293 = vst [vmem:[#allocation2 + $0xb0] sm:$0xff] %v265
    %294 = vst [vmem:[#allocation2 + $0xb8] sm:$0xff] %v268
    %v295 = vld [vmem:[#allocation2] sm:$0xff]
    %v296 = vld [vmem:[#allocation2 + $0x8] sm:$0xff]
    %v297 = vld [vmem:[#allocation2 + $0x10] sm:$0xff]
    %v298 = vld [vmem:[#allocation2 + $0x18] sm:$0xff]
    %v299 = vld [vmem:[#allocation2 + $0x20] sm:$0xff]
    %v300 = vld [vmem:[#allocation2 + $0x28] sm:$0xff]
    %v301 = vld [vmem:[#allocation2 + $0x30] sm:$0xff]
    %v302 = vld [vmem:[#allocation2 + $0x38] sm:$0xff]
    %v303 = vld [vmem:[#allocation2 + $0x40] sm:$0xff]
    %v304 = vld [vmem:[#allocation2 + $0x48] sm:$0xff]
    %v305 = vld [vmem:[#allocation2 + $0x50] sm:$0xff]
    %v306 = vld [vmem:[#allocation2 + $0x58] sm:$0xff]
    %v307 = vld [vmem:[#allocation2 + $0x60] sm:$0xff]
    %v308 = vld [vmem:[#allocation2 + $0x68] sm:$0xff]
    %v309 = vld [vmem:[#allocation2 + $0x70] sm:$0xff]
    %v310 = vld [vmem:[#allocation2 + $0x78] sm:$0xff]
    %v311 = vld [vmem:[#allocation2 + $0x80] sm:$0xff]
    %v312 = vld [vmem:[#allocation2 + $0x88] sm:$0xff]
    %v313 = vld [vmem:[#allocation2 + $0x90] sm:$0xff]
    %v314 = vld [vmem:[#allocation2 + $0x98] sm:$0xff]
    %v315 = vld [vmem:[#allocation2 + $0xa0] sm:$0xff]
    %v316 = vld [vmem:[#allocation2 + $0xa8] sm:$0xff]
    %v317 = vld [vmem:[#allocation2 + $0xb0] sm:$0xff]
    %v318 = vld [vmem:[#allocation2 + $0xb8] sm:$0xf]
    %319 = vst [vmem:[#allocation3] sm:$0xff] %v295
    %320 = vst [vmem:[#allocation3 + $0x8] sm:$0xff] %v296
    %321 = vst [vmem:[#allocation3 + $0x10] sm:$0xff] %v297
    %322 = vst [vmem:[#allocation3 + $0x18] sm:$0xff] %v298
    %323 = vst [vmem:[#allocation3 + $0x20] sm:$0xff] %v299
    %324 = vst [vmem:[#allocation3 + $0x28] sm:$0xff] %v300
    %325 = vst [vmem:[#allocation3 + $0x30] sm:$0xff] %v301
    %326 = vst [vmem:[#allocation3 + $0x38] sm:$0xff] %v302
    %327 = vst [vmem:[#allocation3 + $0x40] sm:$0xff] %v303
    %328 = vst [vmem:[#allocation3 + $0x48] sm:$0xff] %v304
    %329 = vst [vmem:[#allocation3 + $0x50] sm:$0xff] %v305
    %330 = vst [vmem:[#allocation3 + $0x58] sm:$0xff] %v306
    %331 = vst [vmem:[#allocation3 + $0x60] sm:$0xff] %v307
    %332 = vst [vmem:[#allocation3 + $0x68] sm:$0xff] %v308
    %333 = vst [vmem:[#allocation3 + $0x70] sm:$0xff] %v309
    %334 = vst [vmem:[#allocation3 + $0x78] sm:$0xff] %v310
    %335 = vst [vmem:[#allocation3 + $0x80] sm:$0xff] %v311
    %336 = vst [vmem:[#allocation3 + $0x88] sm:$0xff] %v312
    %337 = vst [vmem:[#allocation3 + $0x90] sm:$0xff] %v313
    %338 = vst [vmem:[#allocation3 + $0x98] sm:$0xff] %v314
    %339 = vst [vmem:[#allocation3 + $0xa0] sm:$0xff] %v315
    %340 = vst [vmem:[#allocation3 + $0xa8] sm:$0xff] %v316
    %341 = vst [vmem:[#allocation3 + $0xb0] sm:$0xff] %v317
    %342 = vst [vmem:[#allocation3 + $0xb8] sm:$0xf] %v318
    %s343 = scalar_lea.vmem %s1, 2
    %v344 = vld [vmem:[%s343] sm:$0x3]
    %v346 = vsel %vm138, %v344, 0
    %348 = vmatprep.subr.bf16.mxu0 0
    %349 = vmatpush1.bf16.msra.mxu0 0
    %350 = vmatprep.subr.bf16.mxu0 0
    %351 = vmatpush1.bf16.msra.mxu0 0
    %352 = vmatprep.subr.bf16.mxu0 0
    %353 = vmatpush1.bf16.msra.mxu0 0
    %354 = vmatprep.subr.bf16.mxu0 0
    %355 = vmatpush1.bf16.msra.mxu0 0
    %356 = vmatprep.subr.bf16.mxu0 0
    %357 = vmatpush1.bf16.msra.mxu0 0
    %358 = vmatprep.subr.bf16.mxu0 0
    %359 = vmatpush1.bf16.msra.mxu0 0
    %360 = vmatprep.subr.bf16.mxu0 0
    %361 = vmatpush1.bf16.msra.mxu0 0
    %362 = vmatprep.subr.bf16.mxu0 0
    %363 = vmatpush1.bf16.msra.mxu0 %v346
    %364 = vmatprep.subr.bf16.mxu0 0
    %365 = vmatpush2.bf16.msra.mxu0 0
    %366 = vmatprep.subr.bf16.mxu0 0
    %367 = vmatpush2.bf16.msra.mxu0 0
    %368 = vmatprep.subr.bf16.mxu0 0
    %369 = vmatpush2.bf16.msra.mxu0 0
    %370 = vmatprep.subr.bf16.mxu0 0
    %371 = vmatpush2.bf16.msra.mxu0 0
    %372 = vmatprep.subr.bf16.mxu0 0
    %373 = vmatpush2.bf16.msra.mxu0 0
    %374 = vmatprep.subr.bf16.mxu0 0
    %375 = vmatpush2.bf16.msra.mxu0 0
    %376 = vmatprep.subr.bf16.mxu0 0
    %377 = vmatpush2.bf16.msra.mxu0 0
    %378 = vmatprep.subr.bf16.mxu0 0
    %379 = vmatpush2.bf16.msra.mxu0 0
    %380 = vmatprep.mubr.bf16.mxu0 0
    %381 = vmatmul.mubr.bf16.gmra.mxu0 %v103
    %v382 = vpop.f32.mrf.mxu0
    %v383 = vadd.f32 0.0, %v382
    %v384 = vpop.f32.mrf.mxu0
    %v385 = vpop.f32.mrf.mxu0
    %v386 = vadd.f32 0.0, %v385
    %v387 = vpop.f32.mrf.mxu0
    %388 = vmatprep.mubr.bf16.mxu0 0
    %389 = vmatmul.mubr.bf16.gmra.mxu0 %v106
    %v390 = vpop.f32.mrf.mxu0
    %v391 = vadd.f32 0.0, %v390
    %v392 = vpop.f32.mrf.mxu0
    %v393 = vpop.f32.mrf.mxu0
    %v394 = vadd.f32 0.0, %v393
    %v395 = vpop.f32.mrf.mxu0
    %396 = vmatprep.mubr.bf16.mxu0 0
    %397 = vmatmul.mubr.bf16.gmra.mxu0 %v109
    %v398 = vpop.f32.mrf.mxu0
    %v399 = vadd.f32 0.0, %v398
    %v400 = vpop.f32.mrf.mxu0
    %v401 = vpop.f32.mrf.mxu0
    %v402 = vadd.f32 0.0, %v401
    %v403 = vpop.f32.mrf.mxu0
    %404 = vmatprep.mubr.bf16.mxu0 0
    %405 = vmatmul.mubr.bf16.gmra.mxu0 %v112
    %v406 = vpop.f32.mrf.mxu0
    %v407 = vadd.f32 0.0, %v406
    %v408 = vpop.f32.mrf.mxu0
    %v409 = vpop.f32.mrf.mxu0
    %v410 = vadd.f32 0.0, %v409
    %v411 = vpop.f32.mrf.mxu0
    %412 = vmatprep.mubr.bf16.mxu0 0
    %413 = vmatmul.mubr.bf16.gmra.mxu0 %v115
    %v414 = vpop.f32.mrf.mxu0
    %v415 = vadd.f32 0.0, %v414
    %v416 = vpop.f32.mrf.mxu0
    %v417 = vpop.f32.mrf.mxu0
    %v418 = vadd.f32 0.0, %v417
    %v419 = vpop.f32.mrf.mxu0
    %420 = vmatprep.mubr.bf16.mxu0 0
    %421 = vmatmul.mubr.bf16.gmra.mxu0 %v118
    %v422 = vpop.f32.mrf.mxu0
    %v423 = vadd.f32 0.0, %v422
    %v424 = vpop.f32.mrf.mxu0
    %v425 = vpop.f32.mrf.mxu0
    %v426 = vadd.f32 0.0, %v425
    %v427 = vpop.f32.mrf.mxu0
    %428 = vmatprep.mubr.bf16.mxu0 0
    %429 = vmatmul.mubr.bf16.gmra.mxu0 %v121
    %v430 = vpop.f32.mrf.mxu0
    %v431 = vadd.f32 0.0, %v430
    %v432 = vpop.f32.mrf.mxu0
    %v433 = vpop.f32.mrf.mxu0
    %v434 = vadd.f32 0.0, %v433
    %v435 = vpop.f32.mrf.mxu0
    %436 = vmatprep.mubr.bf16.mxu0 0
    %437 = vmatmul.mubr.bf16.gmra.mxu0 %v124
    %v438 = vpop.f32.mrf.mxu0
    %v439 = vadd.f32 0.0, %v438
    %v440 = vpop.f32.mrf.mxu0
    %v441 = vpop.f32.mrf.mxu0
    %v442 = vadd.f32 0.0, %v441
    %v443 = vpop.f32.mrf.mxu0
    %444 = vmatprep.mubr.bf16.mxu0 0
    %445 = vmatmul.mubr.bf16.gmra.mxu0 %v127
    %v446 = vpop.f32.mrf.mxu0
    %v447 = vadd.f32 0.0, %v446
    %v448 = vpop.f32.mrf.mxu0
    %v449 = vpop.f32.mrf.mxu0
    %v450 = vadd.f32 0.0, %v449
    %v451 = vpop.f32.mrf.mxu0
    %452 = vmatprep.mubr.bf16.mxu0 0
    %453 = vmatmul.mubr.bf16.gmra.mxu0 %v130
    %v454 = vpop.f32.mrf.mxu0
    %v455 = vadd.f32 0.0, %v454
    %v456 = vpop.f32.mrf.mxu0
    %v457 = vpop.f32.mrf.mxu0
    %v458 = vadd.f32 0.0, %v457
    %v459 = vpop.f32.mrf.mxu0
    %460 = vmatprep.mubr.bf16.mxu0 0
    %461 = vmatmul.mubr.bf16.gmra.mxu0 %v133
    %v462 = vpop.f32.mrf.mxu0
    %v463 = vadd.f32 0.0, %v462
    %v464 = vpop.f32.mrf.mxu0
    %v465 = vpop.f32.mrf.mxu0
    %v466 = vadd.f32 0.0, %v465
    %v467 = vpop.f32.mrf.mxu0
    %468 = vmatprep.mubr.bf16.mxu0 0
    %469 = vmatmul.mubr.bf16.gmra.mxu0 %v136
    %v470 = vpop.f32.mrf.mxu0
    %v471 = vadd.f32 0.0, %v470
    %v472 = vpop.f32.mrf.mxu0
    %v473 = vpop.f32.mrf.mxu0
    %v474 = vadd.f32 0.0, %v473
    %v475 = vpop.f32.mrf.mxu0
    %476 = vdwg.mxu0
    %477 = vst [vmem:[#allocation2] sm:$0xff] %v383
    %478 = vst [vmem:[#allocation2 + $0x8] sm:$0xff] %v386
    %479 = vst [vmem:[#allocation2 + $0x10] sm:$0xff] %v391
    %480 = vst [vmem:[#allocation2 + $0x18] sm:$0xff] %v394
    %481 = vst [vmem:[#allocation2 + $0x20] sm:$0xff] %v399
    %482 = vst [vmem:[#allocation2 + $0x28] sm:$0xff] %v402
    %483 = vst [vmem:[#allocation2 + $0x30] sm:$0xff] %v407
    %484 = vst [vmem:[#allocation2 + $0x38] sm:$0xff] %v410
    %485 = vst [vmem:[#allocation2 + $0x40] sm:$0xff] %v415
    %486 = vst [vmem:[#allocation2 + $0x48] sm:$0xff] %v418
    %487 = vst [vmem:[#allocation2 + $0x50] sm:$0xff] %v423
    %488 = vst [vmem:[#allocation2 + $0x58] sm:$0xff] %v426
    %489 = vst [vmem:[#allocation2 + $0x60] sm:$0xff] %v431
    %490 = vst [vmem:[#allocation2 + $0x68] sm:$0xff] %v434
    %491 = vst [vmem:[#allocation2 + $0x70] sm:$0xff] %v439
    %492 = vst [vmem:[#allocation2 + $0x78] sm:$0xff] %v442
    %493 = vst [vmem:[#allocation2 + $0x80] sm:$0xff] %v447
    %494 = vst [vmem:[#allocation2 + $0x88] sm:$0xff] %v450
    %495 = vst [vmem:[#allocation2 + $0x90] sm:$0xff] %v455
    %496 = vst [vmem:[#allocation2 + $0x98] sm:$0xff] %v458
    %497 = vst [vmem:[#allocation2 + $0xa0] sm:$0xff] %v463
    %498 = vst [vmem:[#allocation2 + $0xa8] sm:$0xff] %v466
    %499 = vst [vmem:[#allocation2 + $0xb0] sm:$0xff] %v471
    %500 = vst [vmem:[#allocation2 + $0xb8] sm:$0xff] %v474
    %v501 = vld [vmem:[#allocation2 + $0x1] sm:$0xff]
    %v502 = vld [vmem:[#allocation2 + $0x9] sm:$0xff]
    %v503 = vld [vmem:[#allocation2 + $0x11] sm:$0xff]
    %v504 = vld [vmem:[#allocation2 + $0x19] sm:$0xff]
    %v505 = vld [vmem:[#allocation2 + $0x21] sm:$0xff]
    %v506 = vld [vmem:[#allocation2 + $0x29] sm:$0xff]
    %v507 = vld [vmem:[#allocation2 + $0x31] sm:$0xff]
    %v508 = vld [vmem:[#allocation2 + $0x39] sm:$0xff]
    %v509 = vld [vmem:[#allocation2 + $0x41] sm:$0xff]
    %v510 = vld [vmem:[#allocation2 + $0x49] sm:$0xff]
    %v511 = vld [vmem:[#allocation2 + $0x51] sm:$0xff]
    %v512 = vld [vmem:[#allocation2 + $0x59] sm:$0xff]
    %v513 = vld [vmem:[#allocation2 + $0x61] sm:$0xff]
    %v514 = vld [vmem:[#allocation2 + $0x69] sm:$0xff]
    %v515 = vld [vmem:[#allocation2 + $0x71] sm:$0xff]
    %v516 = vld [vmem:[#allocation2 + $0x79] sm:$0xff]
    %v517 = vld [vmem:[#allocation2 + $0x81] sm:$0xff]
    %v518 = vld [vmem:[#allocation2 + $0x89] sm:$0xff]
    %v519 = vld [vmem:[#allocation2 + $0x91] sm:$0xff]
    %v520 = vld [vmem:[#allocation2 + $0x99] sm:$0xff]
    %v521 = vld [vmem:[#allocation2 + $0xa1] sm:$0xff]
    %v522 = vld [vmem:[#allocation2 + $0xa9] sm:$0xff]
    %v523 = vld [vmem:[#allocation2 + $0xb1] sm:$0xff]
    %v524 = vld [vmem:[#allocation2 + $0xb9] sm:$0xf]
    %v525 = vld [vmem:[#allocation3] sm:$0xff]
    %v526 = vld [vmem:[#allocation3 + $0x8] sm:$0xff]
    %v527 = vld [vmem:[#allocation3 + $0x10] sm:$0xff]
    %v528 = vld [vmem:[#allocation3 + $0x18] sm:$0xff]
    %v529 = vld [vmem:[#allocation3 + $0x20] sm:$0xff]
    %v530 = vld [vmem:[#allocation3 + $0x28] sm:$0xff]
    %v531 = vld [vmem:[#allocation3 + $0x30] sm:$0xff]
    %v532 = vld [vmem:[#allocation3 + $0x38] sm:$0xff]
    %v533 = vld [vmem:[#allocation3 + $0x40] sm:$0xff]
    %v534 = vld [vmem:[#allocation3 + $0x48] sm:$0xff]
    %v535 = vld [vmem:[#allocation3 + $0x50] sm:$0xff]
    %v536 = vld [vmem:[#allocation3 + $0x58] sm:$0xff]
    %v537 = vld [vmem:[#allocation3 + $0x60] sm:$0xff]
    %v538 = vld [vmem:[#allocation3 + $0x68] sm:$0xff]
    %v539 = vld [vmem:[#allocation3 + $0x70] sm:$0xff]
    %v540 = vld [vmem:[#allocation3 + $0x78] sm:$0xff]
    %v541 = vld [vmem:[#allocation3 + $0x80] sm:$0xff]
    %v542 = vld [vmem:[#allocation3 + $0x88] sm:$0xff]
    %v543 = vld [vmem:[#allocation3 + $0x90] sm:$0xff]
    %v544 = vld [vmem:[#allocation3 + $0x98] sm:$0xff]
    %v545 = vld [vmem:[#allocation3 + $0xa0] sm:$0xff]
    %v546 = vld [vmem:[#allocation3 + $0xa8] sm:$0xff]
    %v547 = vld [vmem:[#allocation3 + $0xb0] sm:$0xff]
    %v548 = vld [vmem:[#allocation3 + $0xb8] sm:$0xf]
    %v549 = vadd.f32 %v525, %v501
    %v550 = vadd.f32 %v526, %v502
    %v551 = vadd.f32 %v527, %v503
    %v552 = vadd.f32 %v528, %v504
    %v553 = vadd.f32 %v529, %v505
    %v554 = vadd.f32 %v530, %v506
    %v555 = vadd.f32 %v531, %v507
    %v556 = vadd.f32 %v532, %v508
    %v557 = vadd.f32 %v533, %v509
    %v558 = vadd.f32 %v534, %v510
    %v559 = vadd.f32 %v535, %v511
    %v560 = vadd.f32 %v536, %v512
    %v561 = vadd.f32 %v537, %v513
    %v562 = vadd.f32 %v538, %v514
    %v563 = vadd.f32 %v539, %v515
    %v564 = vadd.f32 %v540, %v516
    %v565 = vadd.f32 %v541, %v517
    %v566 = vadd.f32 %v542, %v518
    %v567 = vadd.f32 %v543, %v519
    %v568 = vadd.f32 %v544, %v520
    %v569 = vadd.f32 %v545, %v521
    %v570 = vadd.f32 %v546, %v522
    %v571 = vadd.f32 %v547, %v523
    %v572 = vadd.f32 %v548, %v524
    %573 = vst [vmem:[#allocation3] sm:$0xff] %v549
    %574 = vst [vmem:[#allocation3 + $0x8] sm:$0xff] %v550
    %575 = vst [vmem:[#allocation3 + $0x10] sm:$0xff] %v551
    %576 = vst [vmem:[#allocation3 + $0x18] sm:$0xff] %v552
    %577 = vst [vmem:[#allocation3 + $0x20] sm:$0xff] %v553
    %578 = vst [vmem:[#allocation3 + $0x28] sm:$0xff] %v554
    %579 = vst [vmem:[#allocation3 + $0x30] sm:$0xff] %v555
    %580 = vst [vmem:[#allocation3 + $0x38] sm:$0xff] %v556
    %581 = vst [vmem:[#allocation3 + $0x40] sm:$0xff] %v557
    %582 = vst [vmem:[#allocation3 + $0x48] sm:$0xff] %v558
    %583 = vst [vmem:[#allocation3 + $0x50] sm:$0xff] %v559
    %584 = vst [vmem:[#allocation3 + $0x58] sm:$0xff] %v560
    %585 = vst [vmem:[#allocation3 + $0x60] sm:$0xff] %v561
    %586 = vst [vmem:[#allocation3 + $0x68] sm:$0xff] %v562
    %587 = vst [vmem:[#allocation3 + $0x70] sm:$0xff] %v563
    %588 = vst [vmem:[#allocation3 + $0x78] sm:$0xff] %v564
    %589 = vst [vmem:[#allocation3 + $0x80] sm:$0xff] %v565
    %590 = vst [vmem:[#allocation3 + $0x88] sm:$0xff] %v566
    %591 = vst [vmem:[#allocation3 + $0x90] sm:$0xff] %v567
    %592 = vst [vmem:[#allocation3 + $0x98] sm:$0xff] %v568
    %593 = vst [vmem:[#allocation3 + $0xa0] sm:$0xff] %v569
    %594 = vst [vmem:[#allocation3 + $0xa8] sm:$0xff] %v570
    %595 = vst [vmem:[#allocation3 + $0xb0] sm:$0xff] %v571
    %596 = vst [vmem:[#allocation3 + $0xb8] sm:$0xf] %v572
    %s597 = scalar_lea.vmem %s1, 4
    %v598 = vld [vmem:[%s597] sm:$0x3]
    %v600 = vsel %vm138, %v598, 0
    %602 = vmatprep.subr.bf16.mxu0 0
    %603 = vmatpush1.bf16.msra.mxu0 0
    %604 = vmatprep.subr.bf16.mxu0 0
    %605 = vmatpush1.bf16.msra.mxu0 0
    %606 = vmatprep.subr.bf16.mxu0 0
    %607 = vmatpush1.bf16.msra.mxu0 0
    %608 = vmatprep.subr.bf16.mxu0 0
    %609 = vmatpush1.bf16.msra.mxu0 0
    %610 = vmatprep.subr.bf16.mxu0 0
    %611 = vmatpush1.bf16.msra.mxu0 0
    %612 = vmatprep.subr.bf16.mxu0 0
    %613 = vmatpush1.bf16.msra.mxu0 0
    %614 = vmatprep.subr.bf16.mxu0 0
    %615 = vmatpush1.bf16.msra.mxu0 0
    %616 = vmatprep.subr.bf16.mxu0 0
    %617 = vmatpush1.bf16.msra.mxu0 %v600
    %618 = vmatprep.subr.bf16.mxu0 0
    %619 = vmatpush2.bf16.msra.mxu0 0
    %620 = vmatprep.subr.bf16.mxu0 0
    %621 = vmatpush2.bf16.msra.mxu0 0
    %622 = vmatprep.subr.bf16.mxu0 0
    %623 = vmatpush2.bf16.msra.mxu0 0
    %624 = vmatprep.subr.bf16.mxu0 0
    %625 = vmatpush2.bf16.msra.mxu0 0
    %626 = vmatprep.subr.bf16.mxu0 0
    %627 = vmatpush2.bf16.msra.mxu0 0
    %628 = vmatprep.subr.bf16.mxu0 0
    %629 = vmatpush2.bf16.msra.mxu0 0
    %630 = vmatprep.subr.bf16.mxu0 0
    %631 = vmatpush2.bf16.msra.mxu0 0
    %632 = vmatprep.subr.bf16.mxu0 0
    %633 = vmatpush2.bf16.msra.mxu0 0
    %634 = vmatprep.mubr.bf16.mxu0 0
    %635 = vmatmul.mubr.bf16.gmra.mxu0 %v103
    %v636 = vpop.f32.mrf.mxu0
    %v637 = vadd.f32 0.0, %v636
    %v638 = vpop.f32.mrf.mxu0
    %v639 = vpop.f32.mrf.mxu0
    %v640 = vadd.f32 0.0, %v639
    %v641 = vpop.f32.mrf.mxu0
    %642 = vmatprep.mubr.bf16.mxu0 0
    %643 = vmatmul.mubr.bf16.gmra.mxu0 %v106
    %v644 = vpop.f32.mrf.mxu0
    %v645 = vadd.f32 0.0, %v644
    %v646 = vpop.f32.mrf.mxu0
    %v647 = vpop.f32.mrf.mxu0
    %v648 = vadd.f32 0.0, %v647
    %v649 = vpop.f32.mrf.mxu0
    %650 = vmatprep.mubr.bf16.mxu0 0
    %651 = vmatmul.mubr.bf16.gmra.mxu0 %v109
    %v652 = vpop.f32.mrf.mxu0
    %v653 = vadd.f32 0.0, %v652
    %v654 = vpop.f32.mrf.mxu0
    %v655 = vpop.f32.mrf.mxu0
    %v656 = vadd.f32 0.0, %v655
    %v657 = vpop.f32.mrf.mxu0
    %658 = vmatprep.mubr.bf16.mxu0 0
    %659 = vmatmul.mubr.bf16.gmra.mxu0 %v112
    %v660 = vpop.f32.mrf.mxu0
    %v661 = vadd.f32 0.0, %v660
    %v662 = vpop.f32.mrf.mxu0
    %v663 = vpop.f32.mrf.mxu0
    %v664 = vadd.f32 0.0, %v663
    %v665 = vpop.f32.mrf.mxu0
    %666 = vmatprep.mubr.bf16.mxu0 0
    %667 = vmatmul.mubr.bf16.gmra.mxu0 %v115
    %v668 = vpop.f32.mrf.mxu0
    %v669 = vadd.f32 0.0, %v668
    %v670 = vpop.f32.mrf.mxu0
    %v671 = vpop.f32.mrf.mxu0
    %v672 = vadd.f32 0.0, %v671
    %v673 = vpop.f32.mrf.mxu0
    %674 = vmatprep.mubr.bf16.mxu0 0
    %675 = vmatmul.mubr.bf16.gmra.mxu0 %v118
    %v676 = vpop.f32.mrf.mxu0
    %v677 = vadd.f32 0.0, %v676
    %v678 = vpop.f32.mrf.mxu0
    %v679 = vpop.f32.mrf.mxu0
    %v680 = vadd.f32 0.0, %v679
    %v681 = vpop.f32.mrf.mxu0
    %682 = vmatprep.mubr.bf16.mxu0 0
    %683 = vmatmul.mubr.bf16.gmra.mxu0 %v121
    %v684 = vpop.f32.mrf.mxu0
    %v685 = vadd.f32 0.0, %v684
    %v686 = vpop.f32.mrf.mxu0
    %v687 = vpop.f32.mrf.mxu0
    %v688 = vadd.f32 0.0, %v687
    %v689 = vpop.f32.mrf.mxu0
    %690 = vmatprep.mubr.bf16.mxu0 0
    %691 = vmatmul.mubr.bf16.gmra.mxu0 %v124
    %v692 = vpop.f32.mrf.mxu0
    %v693 = vadd.f32 0.0, %v692
    %v694 = vpop.f32.mrf.mxu0
    %v695 = vpop.f32.mrf.mxu0
    %v696 = vadd.f32 0.0, %v695
    %v697 = vpop.f32.mrf.mxu0
    %698 = vmatprep.mubr.bf16.mxu0 0
    %699 = vmatmul.mubr.bf16.gmra.mxu0 %v127
    %v700 = vpop.f32.mrf.mxu0
    %v701 = vadd.f32 0.0, %v700
    %v702 = vpop.f32.mrf.mxu0
    %v703 = vpop.f32.mrf.mxu0
    %v704 = vadd.f32 0.0, %v703
    %v705 = vpop.f32.mrf.mxu0
    %706 = vmatprep.mubr.bf16.mxu0 0
    %707 = vmatmul.mubr.bf16.gmra.mxu0 %v130
    %v708 = vpop.f32.mrf.mxu0
    %v709 = vadd.f32 0.0, %v708
    %v710 = vpop.f32.mrf.mxu0
    %v711 = vpop.f32.mrf.mxu0
    %v712 = vadd.f32 0.0, %v711
    %v713 = vpop.f32.mrf.mxu0
    %714 = vmatprep.mubr.bf16.mxu0 0
    %715 = vmatmul.mubr.bf16.gmra.mxu0 %v133
    %v716 = vpop.f32.mrf.mxu0
    %v717 = vadd.f32 0.0, %v716
    %v718 = vpop.f32.mrf.mxu0
    %v719 = vpop.f32.mrf.mxu0
    %v720 = vadd.f32 0.0, %v719
    %v721 = vpop.f32.mrf.mxu0
    %722 = vmatprep.mubr.bf16.mxu0 0
    %723 = vmatmul.mubr.bf16.gmra.mxu0 %v136
    %v724 = vpop.f32.mrf.mxu0
    %v725 = vadd.f32 0.0, %v724
    %v726 = vpop.f32.mrf.mxu0
    %v727 = vpop.f32.mrf.mxu0
    %v728 = vadd.f32 0.0, %v727
    %v729 = vpop.f32.mrf.mxu0
    %730 = vdwg.mxu0
    %731 = vst [vmem:[#allocation2] sm:$0xff] %v637
    %732 = vst [vmem:[#allocation2 + $0x8] sm:$0xff] %v640
    %733 = vst [vmem:[#allocation2 + $0x10] sm:$0xff] %v645
    %734 = vst [vmem:[#allocation2 + $0x18] sm:$0xff] %v648
    %735 = vst [vmem:[#allocation2 + $0x20] sm:$0xff] %v653
    %736 = vst [vmem:[#allocation2 + $0x28] sm:$0xff] %v656
    %737 = vst [vmem:[#allocation2 + $0x30] sm:$0xff] %v661
    %738 = vst [vmem:[#allocation2 + $0x38] sm:$0xff] %v664
    %739 = vst [vmem:[#allocation2 + $0x40] sm:$0xff] %v669
    %740 = vst [vmem:[#allocation2 + $0x48] sm:$0xff] %v672
    %741 = vst [vmem:[#allocation2 + $0x50] sm:$0xff] %v677
    %742 = vst [vmem:[#allocation2 + $0x58] sm:$0xff] %v680
    %743 = vst [vmem:[#allocation2 + $0x60] sm:$0xff] %v685
    %744 = vst [vmem:[#allocation2 + $0x68] sm:$0xff] %v688
    %745 = vst [vmem:[#allocation2 + $0x70] sm:$0xff] %v693
    %746 = vst [vmem:[#allocation2 + $0x78] sm:$0xff] %v696
    %747 = vst [vmem:[#allocation2 + $0x80] sm:$0xff] %v701
    %748 = vst [vmem:[#allocation2 + $0x88] sm:$0xff] %v704
    %749 = vst [vmem:[#allocation2 + $0x90] sm:$0xff] %v709
    %750 = vst [vmem:[#allocation2 + $0x98] sm:$0xff] %v712
    %751 = vst [vmem:[#allocation2 + $0xa0] sm:$0xff] %v717
    %752 = vst [vmem:[#allocation2 + $0xa8] sm:$0xff] %v720
    %753 = vst [vmem:[#allocation2 + $0xb0] sm:$0xff] %v725
    %754 = vst [vmem:[#allocation2 + $0xb8] sm:$0xff] %v728
    %v755 = vld [vmem:[#allocation2 + $0x2] sm:$0xff]
    %v756 = vld [vmem:[#allocation2 + $0xa] sm:$0xff]
    %v757 = vld [vmem:[#allocation2 + $0x12] sm:$0xff]
    %v758 = vld [vmem:[#allocation2 + $0x1a] sm:$0xff]
    %v759 = vld [vmem:[#allocation2 + $0x22] sm:$0xff]
    %v760 = vld [vmem:[#allocation2 + $0x2a] sm:$0xff]
    %v761 = vld [vmem:[#allocation2 + $0x32] sm:$0xff]
    %v762 = vld [vmem:[#allocation2 + $0x3a] sm:$0xff]
    %v763 = vld [vmem:[#allocation2 + $0x42] sm:$0xff]
    %v764 = vld [vmem:[#allocation2 + $0x4a] sm:$0xff]
    %v765 = vld [vmem:[#allocation2 + $0x52] sm:$0xff]
    %v766 = vld [vmem:[#allocation2 + $0x5a] sm:$0xff]
    %v767 = vld [vmem:[#allocation2 + $0x62] sm:$0xff]
    %v768 = vld [vmem:[#allocation2 + $0x6a] sm:$0xff]
    %v769 = vld [vmem:[#allocation2 + $0x72] sm:$0xff]
    %v770 = vld [vmem:[#allocation2 + $0x7a] sm:$0xff]
    %v771 = vld [vmem:[#allocation2 + $0x82] sm:$0xff]
    %v772 = vld [vmem:[#allocation2 + $0x8a] sm:$0xff]
    %v773 = vld [vmem:[#allocation2 + $0x92] sm:$0xff]
    %v774 = vld [vmem:[#allocation2 + $0x9a] sm:$0xff]
    %v775 = vld [vmem:[#allocation2 + $0xa2] sm:$0xff]
    %v776 = vld [vmem:[#allocation2 + $0xaa] sm:$0xff]
    %v777 = vld [vmem:[#allocation2 + $0xb2] sm:$0xff]
    %v778 = vld [vmem:[#allocation2 + $0xba] sm:$0xf]
    %v779 = vld [vmem:[#allocation3] sm:$0xff]
    %v780 = vld [vmem:[#allocation3 + $0x8] sm:$0xff]
    %v781 = vld [vmem:[#allocation3 + $0x10] sm:$0xff]
    %v782 = vld [vmem:[#allocation3 + $0x18] sm:$0xff]
    %v783 = vld [vmem:[#allocation3 + $0x20] sm:$0xff]
    %v784 = vld [vmem:[#allocation3 + $0x28] sm:$0xff]
    %v785 = vld [vmem:[#allocation3 + $0x30] sm:$0xff]
    %v786 = vld [vmem:[#allocation3 + $0x38] sm:$0xff]
    %v787 = vld [vmem:[#allocation3 + $0x40] sm:$0xff]
    %v788 = vld [vmem:[#allocation3 + $0x48] sm:$0xff]
    %v789 = vld [vmem:[#allocation3 + $0x50] sm:$0xff]
    %v790 = vld [vmem:[#allocation3 + $0x58] sm:$0xff]
    %v791 = vld [vmem:[#allocation3 + $0x60] sm:$0xff]
    %v792 = vld [vmem:[#allocation3 + $0x68] sm:$0xff]
    %v793 = vld [vmem:[#allocation3 + $0x70] sm:$0xff]
    %v794 = vld [vmem:[#allocation3 + $0x78] sm:$0xff]
    %v795 = vld [vmem:[#allocation3 + $0x80] sm:$0xff]
    %v796 = vld [vmem:[#allocation3 + $0x88] sm:$0xff]
    %v797 = vld [vmem:[#allocation3 + $0x90] sm:$0xff]
    %v798 = vld [vmem:[#allocation3 + $0x98] sm:$0xff]
    %v799 = vld [vmem:[#allocation3 + $0xa0] sm:$0xff]
    %v800 = vld [vmem:[#allocation3 + $0xa8] sm:$0xff]
    %v801 = vld [vmem:[#allocation3 + $0xb0] sm:$0xff]
    %v802 = vld [vmem:[#allocation3 + $0xb8] sm:$0xf]
    %v803 = vadd.f32 %v779, %v755
    %v804 = vadd.f32 %v780, %v756
    %v805 = vadd.f32 %v781, %v757
    %v806 = vadd.f32 %v782, %v758
    %v807 = vadd.f32 %v783, %v759
    %v808 = vadd.f32 %v784, %v760
    %v809 = vadd.f32 %v785, %v761
    %v810 = vadd.f32 %v786, %v762
    %v811 = vadd.f32 %v787, %v763
    %v812 = vadd.f32 %v788, %v764
    %v813 = vadd.f32 %v789, %v765
    %v814 = vadd.f32 %v790, %v766
    %v815 = vadd.f32 %v791, %v767
    %v816 = vadd.f32 %v792, %v768
    %v817 = vadd.f32 %v793, %v769
    %v818 = vadd.f32 %v794, %v770
    %v819 = vadd.f32 %v795, %v771
    %v820 = vadd.f32 %v796, %v772
    %v821 = vadd.f32 %v797, %v773
    %v822 = vadd.f32 %v798, %v774
    %v823 = vadd.f32 %v799, %v775
    %v824 = vadd.f32 %v800, %v776
    %v825 = vadd.f32 %v801, %v777
    %v826 = vadd.f32 %v802, %v778
    %827 = vst [vmem:[#allocation3] sm:$0xff] %v803
    %828 = vst [vmem:[#allocation3 + $0x8] sm:$0xff] %v804
    %829 = vst [vmem:[#allocation3 + $0x10] sm:$0xff] %v805
    %830 = vst [vmem:[#allocation3 + $0x18] sm:$0xff] %v806
    %831 = vst [vmem:[#allocation3 + $0x20] sm:$0xff] %v807
    %832 = vst [vmem:[#allocation3 + $0x28] sm:$0xff] %v808
    %833 = vst [vmem:[#allocation3 + $0x30] sm:$0xff] %v809
    %834 = vst [vmem:[#allocation3 + $0x38] sm:$0xff] %v810
    %835 = vst [vmem:[#allocation3 + $0x40] sm:$0xff] %v811
    %836 = vst [vmem:[#allocation3 + $0x48] sm:$0xff] %v812
    %837 = vst [vmem:[#allocation3 + $0x50] sm:$0xff] %v813
    %838 = vst [vmem:[#allocation3 + $0x58] sm:$0xff] %v814
    %839 = vst [vmem:[#allocation3 + $0x60] sm:$0xff] %v815
    %840 = vst [vmem:[#allocation3 + $0x68] sm:$0xff] %v816
    %841 = vst [vmem:[#allocation3 + $0x70] sm:$0xff] %v817
    %842 = vst [vmem:[#allocation3 + $0x78] sm:$0xff] %v818
    %843 = vst [vmem:[#allocation3 + $0x80] sm:$0xff] %v819
    %844 = vst [vmem:[#allocation3 + $0x88] sm:$0xff] %v820
    %845 = vst [vmem:[#allocation3 + $0x90] sm:$0xff] %v821
    %846 = vst [vmem:[#allocation3 + $0x98] sm:$0xff] %v822
    %847 = vst [vmem:[#allocation3 + $0xa0] sm:$0xff] %v823
    %848 = vst [vmem:[#allocation3 + $0xa8] sm:$0xff] %v824
    %849 = vst [vmem:[#allocation3 + $0xb0] sm:$0xff] %v825
    %850 = vst [vmem:[#allocation3 + $0xb8] sm:$0xf] %v826
    %s851 = scalar_lea.vmem %s1, 6
    %v852 = vld [vmem:[%s851] sm:$0x3]
    %v854 = vsel %vm138, %v852, 0
    %856 = vmatprep.subr.bf16.mxu0 0
    %857 = vmatpush1.bf16.msra.mxu0 0
    %858 = vmatprep.subr.bf16.mxu0 0
    %859 = vmatpush1.bf16.msra.mxu0 0
    %860 = vmatprep.subr.bf16.mxu0 0
    %861 = vmatpush1.bf16.msra.mxu0 0
    %862 = vmatprep.subr.bf16.mxu0 0
    %863 = vmatpush1.bf16.msra.mxu0 0
    %864 = vmatprep.subr.bf16.mxu0 0
    %865 = vmatpush1.bf16.msra.mxu0 0
    %866 = vmatprep.subr.bf16.mxu0 0
    %867 = vmatpush1.bf16.msra.mxu0 0
    %868 = vmatprep.subr.bf16.mxu0 0
    %869 = vmatpush1.bf16.msra.mxu0 0
    %870 = vmatprep.subr.bf16.mxu0 0
    %871 = vmatpush1.bf16.msra.mxu0 %v854
    %872 = vmatprep.subr.bf16.mxu0 0
    %873 = vmatpush2.bf16.msra.mxu0 0
    %874 = vmatprep.subr.bf16.mxu0 0
    %875 = vmatpush2.bf16.msra.mxu0 0
    %876 = vmatprep.subr.bf16.mxu0 0
    %877 = vmatpush2.bf16.msra.mxu0 0
    %878 = vmatprep.subr.bf16.mxu0 0
    %879 = vmatpush2.bf16.msra.mxu0 0
    %880 = vmatprep.subr.bf16.mxu0 0
    %881 = vmatpush2.bf16.msra.mxu0 0
    %882 = vmatprep.subr.bf16.mxu0 0
    %883 = vmatpush2.bf16.msra.mxu0 0
    %884 = vmatprep.subr.bf16.mxu0 0
    %885 = vmatpush2.bf16.msra.mxu0 0
    %886 = vmatprep.subr.bf16.mxu0 0
    %887 = vmatpush2.bf16.msra.mxu0 0
    %888 = vmatprep.mubr.bf16.mxu0 0
    %889 = vmatmul.mubr.bf16.gmra.mxu0 %v103
    %v890 = vpop.f32.mrf.mxu0
    %v891 = vadd.f32 0.0, %v890
    %v892 = vpop.f32.mrf.mxu0
    %v893 = vpop.f32.mrf.mxu0
    %v894 = vadd.f32 0.0, %v893
    %v895 = vpop.f32.mrf.mxu0
    %896 = vmatprep.mubr.bf16.mxu0 0
    %897 = vmatmul.mubr.bf16.gmra.mxu0 %v106
    %v898 = vpop.f32.mrf.mxu0
    %v899 = vadd.f32 0.0, %v898
    %v900 = vpop.f32.mrf.mxu0
    %v901 = vpop.f32.mrf.mxu0
    %v902 = vadd.f32 0.0, %v901
    %v903 = vpop.f32.mrf.mxu0
    %904 = vmatprep.mubr.bf16.mxu0 0
    %905 = vmatmul.mubr.bf16.gmra.mxu0 %v109
    %v906 = vpop.f32.mrf.mxu0
    %v907 = vadd.f32 0.0, %v906
    %v908 = vpop.f32.mrf.mxu0
    %v909 = vpop.f32.mrf.mxu0
    %v910 = vadd.f32 0.0, %v909
    %v911 = vpop.f32.mrf.mxu0
    %912 = vmatprep.mubr.bf16.mxu0 0
    %913 = vmatmul.mubr.bf16.gmra.mxu0 %v112
    %v914 = vpop.f32.mrf.mxu0
    %v915 = vadd.f32 0.0, %v914
    %v916 = vpop.f32.mrf.mxu0
    %v917 = vpop.f32.mrf.mxu0
    %v918 = vadd.f32 0.0, %v917
    %v919 = vpop.f32.mrf.mxu0
    %920 = vmatprep.mubr.bf16.mxu0 0
    %921 = vmatmul.mubr.bf16.gmra.mxu0 %v115
    %v922 = vpop.f32.mrf.mxu0
    %v923 = vadd.f32 0.0, %v922
    %v924 = vpop.f32.mrf.mxu0
    %v925 = vpop.f32.mrf.mxu0
    %v926 = vadd.f32 0.0, %v925
    %v927 = vpop.f32.mrf.mxu0
    %928 = vmatprep.mubr.bf16.mxu0 0
    %929 = vmatmul.mubr.bf16.gmra.mxu0 %v118
    %v930 = vpop.f32.mrf.mxu0
    %v931 = vadd.f32 0.0, %v930
    %v932 = vpop.f32.mrf.mxu0
    %v933 = vpop.f32.mrf.mxu0
    %v934 = vadd.f32 0.0, %v933
    %v935 = vpop.f32.mrf.mxu0
    %936 = vmatprep.mubr.bf16.mxu0 0
    %937 = vmatmul.mubr.bf16.gmra.mxu0 %v121
    %v938 = vpop.f32.mrf.mxu0
    %v939 = vadd.f32 0.0, %v938
    %v940 = vpop.f32.mrf.mxu0
    %v941 = vpop.f32.mrf.mxu0
    %v942 = vadd.f32 0.0, %v941
    %v943 = vpop.f32.mrf.mxu0
    %944 = vmatprep.mubr.bf16.mxu0 0
    %945 = vmatmul.mubr.bf16.gmra.mxu0 %v124
    %v946 = vpop.f32.mrf.mxu0
    %v947 = vadd.f32 0.0, %v946
    %v948 = vpop.f32.mrf.mxu0
    %v949 = vpop.f32.mrf.mxu0
    %v950 = vadd.f32 0.0, %v949
    %v951 = vpop.f32.mrf.mxu0
    %952 = vmatprep.mubr.bf16.mxu0 0
    %953 = vmatmul.mubr.bf16.gmra.mxu0 %v127
    %v954 = vpop.f32.mrf.mxu0
    %v955 = vadd.f32 0.0, %v954
    %v956 = vpop.f32.mrf.mxu0
    %v957 = vpop.f32.mrf.mxu0
    %v958 = vadd.f32 0.0, %v957
    %v959 = vpop.f32.mrf.mxu0
    %960 = vmatprep.mubr.bf16.mxu0 0
    %961 = vmatmul.mubr.bf16.gmra.mxu0 %v130
    %v962 = vpop.f32.mrf.mxu0
    %v963 = vadd.f32 0.0, %v962
    %v964 = vpop.f32.mrf.mxu0
    %v965 = vpop.f32.mrf.mxu0
    %v966 = vadd.f32 0.0, %v965
    %v967 = vpop.f32.mrf.mxu0
    %968 = vmatprep.mubr.bf16.mxu0 0
    %969 = vmatmul.mubr.bf16.gmra.mxu0 %v133
    %v970 = vpop.f32.mrf.mxu0
    %v971 = vadd.f32 0.0, %v970
    %v972 = vpop.f32.mrf.mxu0
    %v973 = vpop.f32.mrf.mxu0
    %v974 = vadd.f32 0.0, %v973
    %v975 = vpop.f32.mrf.mxu0
    %976 = vmatprep.mubr.bf16.mxu0 0
    %977 = vmatmul.mubr.bf16.gmra.mxu0 %v136
    %v978 = vpop.f32.mrf.mxu0
    %v979 = vadd.f32 0.0, %v978
    %v980 = vpop.f32.mrf.mxu0
    %v981 = vpop.f32.mrf.mxu0
    %v982 = vadd.f32 0.0, %v981
    %v983 = vpop.f32.mrf.mxu0
    %984 = vdwg.mxu0
    %985 = vst [vmem:[#allocation2] sm:$0xff] %v891
    %986 = vst [vmem:[#allocation2 + $0x8] sm:$0xff] %v894
    %987 = vst [vmem:[#allocation2 + $0x10] sm:$0xff] %v899
    %988 = vst [vmem:[#allocation2 + $0x18] sm:$0xff] %v902
    %989 = vst [vmem:[#allocation2 + $0x20] sm:$0xff] %v907
    %990 = vst [vmem:[#allocation2 + $0x28] sm:$0xff] %v910
    %991 = vst [vmem:[#allocation2 + $0x30] sm:$0xff] %v915
    %992 = vst [vmem:[#allocation2 + $0x38] sm:$0xff] %v918
    %993 = vst [vmem:[#allocation2 + $0x40] sm:$0xff] %v923
    %994 = vst [vmem:[#allocation2 + $0x48] sm:$0xff] %v926
    %995 = vst [vmem:[#allocation2 + $0x50] sm:$0xff] %v931
    %996 = vst [vmem:[#allocation2 + $0x58] sm:$0xff] %v934
    %997 = vst [vmem:[#allocation2 + $0x60] sm:$0xff] %v939
    %998 = vst [vmem:[#allocation2 + $0x68] sm:$0xff] %v942
    %999 = vst [vmem:[#allocation2 + $0x70] sm:$0xff] %v947
    %1000 = vst [vmem:[#allocation2 + $0x78] sm:$0xff] %v950
    %1001 = vst [vmem:[#allocation2 + $0x80] sm:$0xff] %v955
    %1002 = vst [vmem:[#allocation2 + $0x88] sm:$0xff] %v958
    %1003 = vst [vmem:[#allocation2 + $0x90] sm:$0xff] %v963
    %1004 = vst [vmem:[#allocation2 + $0x98] sm:$0xff] %v966
    %1005 = vst [vmem:[#allocation2 + $0xa0] sm:$0xff] %v971
    %1006 = vst [vmem:[#allocation2 + $0xa8] sm:$0xff] %v974
    %1007 = vst [vmem:[#allocation2 + $0xb0] sm:$0xff] %v979
    %1008 = vst [vmem:[#allocation2 + $0xb8] sm:$0xff] %v982
    %v1009 = vld [vmem:[#allocation2 + $0x3] sm:$0xff]
    %v1010 = vld [vmem:[#allocation2 + $0xb] sm:$0xff]
    %v1011 = vld [vmem:[#allocation2 + $0x13] sm:$0xff]
    %v1012 = vld [vmem:[#allocation2 + $0x1b] sm:$0xff]
    %v1013 = vld [vmem:[#allocation2 + $0x23] sm:$0xff]
    %v1014 = vld [vmem:[#allocation2 + $0x2b] sm:$0xff]
    %v1015 = vld [vmem:[#allocation2 + $0x33] sm:$0xff]
    %v1016 = vld [vmem:[#allocation2 + $0x3b] sm:$0xff]
    %v1017 = vld [vmem:[#allocation2 + $0x43] sm:$0xff]
    %v1018 = vld [vmem:[#allocation2 + $0x4b] sm:$0xff]
    %v1019 = vld [vmem:[#allocation2 + $0x53] sm:$0xff]
    %v1020 = vld [vmem:[#allocation2 + $0x5b] sm:$0xff]
    %v1021 = vld [vmem:[#allocation2 + $0x63] sm:$0xff]
    %v1022 = vld [vmem:[#allocation2 + $0x6b] sm:$0xff]
    %v1023 = vld [vmem:[#allocation2 + $0x73] sm:$0xff]
    %v1024 = vld [vmem:[#allocation2 + $0x7b] sm:$0xff]
    %v1025 = vld [vmem:[#allocation2 + $0x83] sm:$0xff]
    %v1026 = vld [vmem:[#allocation2 + $0x8b] sm:$0xff]
    %v1027 = vld [vmem:[#allocation2 + $0x93] sm:$0xff]
    %v1028 = vld [vmem:[#allocation2 + $0x9b] sm:$0xff]
    %v1029 = vld [vmem:[#allocation2 + $0xa3] sm:$0xff]
    %v1030 = vld [vmem:[#allocation2 + $0xab] sm:$0xff]
    %v1031 = vld [vmem:[#allocation2 + $0xb3] sm:$0xff]
    %v1032 = vld [vmem:[#allocation2 + $0xbb] sm:$0xf]
    %v1033 = vld [vmem:[#allocation3] sm:$0xff]
    %v1034 = vld [vmem:[#allocation3 + $0x8] sm:$0xff]
    %v1035 = vld [vmem:[#allocation3 + $0x10] sm:$0xff]
    %v1036 = vld [vmem:[#allocation3 + $0x18] sm:$0xff]
    %v1037 = vld [vmem:[#allocation3 + $0x20] sm:$0xff]
    %v1038 = vld [vmem:[#allocation3 + $0x28] sm:$0xff]
    %v1039 = vld [vmem:[#allocation3 + $0x30] sm:$0xff]
    %v1040 = vld [vmem:[#allocation3 + $0x38] sm:$0xff]
    %v1041 = vld [vmem:[#allocation3 + $0x40] sm:$0xff]
    %v1042 = vld [vmem:[#allocation3 + $0x48] sm:$0xff]
    %v1043 = vld [vmem:[#allocation3 + $0x50] sm:$0xff]
    %v1044 = vld [vmem:[#allocation3 + $0x58] sm:$0xff]
    %v1045 = vld [vmem:[#allocation3 + $0x60] sm:$0xff]
    %v1046 = vld [vmem:[#allocation3 + $0x68] sm:$0xff]
    %v1047 = vld [vmem:[#allocation3 + $0x70] sm:$0xff]
    %v1048 = vld [vmem:[#allocation3 + $0x78] sm:$0xff]
    %v1049 = vld [vmem:[#allocation3 + $0x80] sm:$0xff]
    %v1050 = vld [vmem:[#allocation3 + $0x88] sm:$0xff]
    %v1051 = vld [vmem:[#allocation3 + $0x90] sm:$0xff]
    %v1052 = vld [vmem:[#allocation3 + $0x98] sm:$0xff]
    %v1053 = vld [vmem:[#allocation3 + $0xa0] sm:$0xff]
    %v1054 = vld [vmem:[#allocation3 + $0xa8] sm:$0xff]
    %v1055 = vld [vmem:[#allocation3 + $0xb0] sm:$0xff]
    %v1056 = vld [vmem:[#allocation3 + $0xb8] sm:$0xf]
    %v1057 = vadd.f32 %v1033, %v1009
    %v1058 = vadd.f32 %v1034, %v1010
    %v1059 = vadd.f32 %v1035, %v1011
    %v1060 = vadd.f32 %v1036, %v1012
    %v1061 = vadd.f32 %v1037, %v1013
    %v1062 = vadd.f32 %v1038, %v1014
    %v1063 = vadd.f32 %v1039, %v1015
    %v1064 = vadd.f32 %v1040, %v1016
    %v1065 = vadd.f32 %v1041, %v1017
    %v1066 = vadd.f32 %v1042, %v1018
    %v1067 = vadd.f32 %v1043, %v1019
    %v1068 = vadd.f32 %v1044, %v1020
    %v1069 = vadd.f32 %v1045, %v1021
    %v1070 = vadd.f32 %v1046, %v1022
    %v1071 = vadd.f32 %v1047, %v1023
    %v1072 = vadd.f32 %v1048, %v1024
    %v1073 = vadd.f32 %v1049, %v1025
    %v1074 = vadd.f32 %v1050, %v1026
    %v1075 = vadd.f32 %v1051, %v1027
    %v1076 = vadd.f32 %v1052, %v1028
    %v1077 = vadd.f32 %v1053, %v1029
    %v1078 = vadd.f32 %v1054, %v1030
    %v1079 = vadd.f32 %v1055, %v1031
    %v1080 = vadd.f32 %v1056, %v1032
    %1081 = vst [vmem:[#allocation3] sm:$0xff] %v1057
    %1082 = vst [vmem:[#allocation3 + $0x8] sm:$0xff] %v1058
    %1083 = vst [vmem:[#allocation3 + $0x10] sm:$0xff] %v1059
    %1084 = vst [vmem:[#allocation3 + $0x18] sm:$0xff] %v1060
    %1085 = vst [vmem:[#allocation3 + $0x20] sm:$0xff] %v1061
    %1086 = vst [vmem:[#allocation3 + $0x28] sm:$0xff] %v1062
    %1087 = vst [vmem:[#allocation3 + $0x30] sm:$0xff] %v1063
    %1088 = vst [vmem:[#allocation3 + $0x38] sm:$0xff] %v1064
    %1089 = vst [vmem:[#allocation3 + $0x40] sm:$0xff] %v1065
    %1090 = vst [vmem:[#allocation3 + $0x48] sm:$0xff] %v1066
    %1091 = vst [vmem:[#allocation3 + $0x50] sm:$0xff] %v1067
    %1092 = vst [vmem:[#allocation3 + $0x58] sm:$0xff] %v1068
    %1093 = vst [vmem:[#allocation3 + $0x60] sm:$0xff] %v1069
    %1094 = vst [vmem:[#allocation3 + $0x68] sm:$0xff] %v1070
    %1095 = vst [vmem:[#allocation3 + $0x70] sm:$0xff] %v1071
    %1096 = vst [vmem:[#allocation3 + $0x78] sm:$0xff] %v1072
    %1097 = vst [vmem:[#allocation3 + $0x80] sm:$0xff] %v1073
    %1098 = vst [vmem:[#allocation3 + $0x88] sm:$0xff] %v1074
    %1099 = vst [vmem:[#allocation3 + $0x90] sm:$0xff] %v1075
    %1100 = vst [vmem:[#allocation3 + $0x98] sm:$0xff] %v1076
    %1101 = vst [vmem:[#allocation3 + $0xa0] sm:$0xff] %v1077
    %1102 = vst [vmem:[#allocation3 + $0xa8] sm:$0xff] %v1078
    %1103 = vst [vmem:[#allocation3 + $0xb0] sm:$0xff] %v1079
    %1104 = vst [vmem:[#allocation3 + $0xb8] sm:$0xf] %v1080
    %s1105 = scalar_lea.vmem %s1, 8
    %v1106 = vld [vmem:[%s1105] sm:$0x3]
    %v1108 = vsel %vm138, %v1106, 0
    %1110 = vmatprep.subr.bf16.mxu0 0
    %1111 = vmatpush1.bf16.msra.mxu0 0
    %1112 = vmatprep.subr.bf16.mxu0 0
    %1113 = vmatpush1.bf16.msra.mxu0 0
    %1114 = vmatprep.subr.bf16.mxu0 0
    %1115 = vmatpush1.bf16.msra.mxu0 0
    %1116 = vmatprep.subr.bf16.mxu0 0
    %1117 = vmatpush1.bf16.msra.mxu0 0
    %1118 = vmatprep.subr.bf16.mxu0 0
    %1119 = vmatpush1.bf16.msra.mxu0 0
    %1120 = vmatprep.subr.bf16.mxu0 0
    %1121 = vmatpush1.bf16.msra.mxu0 0
    %1122 = vmatprep.subr.bf16.mxu0 0
    %1123 = vmatpush1.bf16.msra.mxu0 0
    %1124 = vmatprep.subr.bf16.mxu0 0
    %1125 = vmatpush1.bf16.msra.mxu0 %v1108
    %1126 = vmatprep.subr.bf16.mxu0 0
    %1127 = vmatpush2.bf16.msra.mxu0 0
    %1128 = vmatprep.subr.bf16.mxu0 0
    %1129 = vmatpush2.bf16.msra.mxu0 0
    %1130 = vmatprep.subr.bf16.mxu0 0
    %1131 = vmatpush2.bf16.msra.mxu0 0
    %1132 = vmatprep.subr.bf16.mxu0 0
    %1133 = vmatpush2.bf16.msra.mxu0 0
    %1134 = vmatprep.subr.bf16.mxu0 0
    %1135 = vmatpush2.bf16.msra.mxu0 0
    %1136 = vmatprep.subr.bf16.mxu0 0
    %1137 = vmatpush2.bf16.msra.mxu0 0
    %1138 = vmatprep.subr.bf16.mxu0 0
    %1139 = vmatpush2.bf16.msra.mxu0 0
    %1140 = vmatprep.subr.bf16.mxu0 0
    %1141 = vmatpush2.bf16.msra.mxu0 0
    %1142 = vmatprep.mubr.bf16.mxu0 0
    %1143 = vmatmul.mubr.bf16.gmra.mxu0 %v103
    %v1144 = vpop.f32.mrf.mxu0
    %v1145 = vadd.f32 0.0, %v1144
    %v1146 = vpop.f32.mrf.mxu0
    %v1147 = vpop.f32.mrf.mxu0
    %v1148 = vadd.f32 0.0, %v1147
    %v1149 = vpop.f32.mrf.mxu0
    %1150 = vmatprep.mubr.bf16.mxu0 0
    %1151 = vmatmul.mubr.bf16.gmra.mxu0 %v106
    %v1152 = vpop.f32.mrf.mxu0
    %v1153 = vadd.f32 0.0, %v1152
    %v1154 = vpop.f32.mrf.mxu0
    %v1155 = vpop.f32.mrf.mxu0
    %v1156 = vadd.f32 0.0, %v1155
    %v1157 = vpop.f32.mrf.mxu0
    %1158 = vmatprep.mubr.bf16.mxu0 0
    %1159 = vmatmul.mubr.bf16.gmra.mxu0 %v109
    %v1160 = vpop.f32.mrf.mxu0
    %v1161 = vadd.f32 0.0, %v1160
    %v1162 = vpop.f32.mrf.mxu0
    %v1163 = vpop.f32.mrf.mxu0
    %v1164 = vadd.f32 0.0, %v1163
    %v1165 = vpop.f32.mrf.mxu0
    %1166 = vmatprep.mubr.bf16.mxu0 0
    %1167 = vmatmul.mubr.bf16.gmra.mxu0 %v112
    %v1168 = vpop.f32.mrf.mxu0
    %v1169 = vadd.f32 0.0, %v1168
    %v1170 = vpop.f32.mrf.mxu0
    %v1171 = vpop.f32.mrf.mxu0
    %v1172 = vadd.f32 0.0, %v1171
    %v1173 = vpop.f32.mrf.mxu0
    %1174 = vmatprep.mubr.bf16.mxu0 0
    %1175 = vmatmul.mubr.bf16.gmra.mxu0 %v115
    %v1176 = vpop.f32.mrf.mxu0
    %v1177 = vadd.f32 0.0, %v1176
    %v1178 = vpop.f32.mrf.mxu0
    %v1179 = vpop.f32.mrf.mxu0
    %v1180 = vadd.f32 0.0, %v1179
    %v1181 = vpop.f32.mrf.mxu0
    %1182 = vmatprep.mubr.bf16.mxu0 0
    %1183 = vmatmul.mubr.bf16.gmra.mxu0 %v118
    %v1184 = vpop.f32.mrf.mxu0
    %v1185 = vadd.f32 0.0, %v1184
    %v1186 = vpop.f32.mrf.mxu0
    %v1187 = vpop.f32.mrf.mxu0
    %v1188 = vadd.f32 0.0, %v1187
    %v1189 = vpop.f32.mrf.mxu0
    %1190 = vmatprep.mubr.bf16.mxu0 0
    %1191 = vmatmul.mubr.bf16.gmra.mxu0 %v121
    %v1192 = vpop.f32.mrf.mxu0
    %v1193 = vadd.f32 0.0, %v1192
    %v1194 = vpop.f32.mrf.mxu0
    %v1195 = vpop.f32.mrf.mxu0
    %v1196 = vadd.f32 0.0, %v1195
    %v1197 = vpop.f32.mrf.mxu0
    %1198 = vmatprep.mubr.bf16.mxu0 0
    %1199 = vmatmul.mubr.bf16.gmra.mxu0 %v124
    %v1200 = vpop.f32.mrf.mxu0
    %v1201 = vadd.f32 0.0, %v1200
    %v1202 = vpop.f32.mrf.mxu0
    %v1203 = vpop.f32.mrf.mxu0
    %v1204 = vadd.f32 0.0, %v1203
    %v1205 = vpop.f32.mrf.mxu0
    %1206 = vmatprep.mubr.bf16.mxu0 0
    %1207 = vmatmul.mubr.bf16.gmra.mxu0 %v127
    %v1208 = vpop.f32.mrf.mxu0
    %v1209 = vadd.f32 0.0, %v1208
    %v1210 = vpop.f32.mrf.mxu0
    %v1211 = vpop.f32.mrf.mxu0
    %v1212 = vadd.f32 0.0, %v1211
    %v1213 = vpop.f32.mrf.mxu0
    %1214 = vmatprep.mubr.bf16.mxu0 0
    %1215 = vmatmul.mubr.bf16.gmra.mxu0 %v130
    %v1216 = vpop.f32.mrf.mxu0
    %v1217 = vadd.f32 0.0, %v1216
    %v1218 = vpop.f32.mrf.mxu0
    %v1219 = vpop.f32.mrf.mxu0
    %v1220 = vadd.f32 0.0, %v1219
    %v1221 = vpop.f32.mrf.mxu0
    %1222 = vmatprep.mubr.bf16.mxu0 0
    %1223 = vmatmul.mubr.bf16.gmra.mxu0 %v133
    %v1224 = vpop.f32.mrf.mxu0
    %v1225 = vadd.f32 0.0, %v1224
    %v1226 = vpop.f32.mrf.mxu0
    %v1227 = vpop.f32.mrf.mxu0
    %v1228 = vadd.f32 0.0, %v1227
    %v1229 = vpop.f32.mrf.mxu0
    %1230 = vmatprep.mubr.bf16.mxu0 0
    %1231 = vmatmul.mubr.bf16.gmra.mxu0 %v136
    %v1232 = vpop.f32.mrf.mxu0
    %v1233 = vadd.f32 0.0, %v1232
    %v1234 = vpop.f32.mrf.mxu0
    %v1235 = vpop.f32.mrf.mxu0
    %v1236 = vadd.f32 0.0, %v1235
    %v1237 = vpop.f32.mrf.mxu0
    %1238 = vdwg.mxu0
    %1239 = vst [vmem:[#allocation2] sm:$0xff] %v1145
    %1240 = vst [vmem:[#allocation2 + $0x8] sm:$0xff] %v1148
    %1241 = vst [vmem:[#allocation2 + $0x10] sm:$0xff] %v1153
    %1242 = vst [vmem:[#allocation2 + $0x18] sm:$0xff] %v1156
    %1243 = vst [vmem:[#allocation2 + $0x20] sm:$0xff] %v1161
    %1244 = vst [vmem:[#allocation2 + $0x28] sm:$0xff] %v1164
    %1245 = vst [vmem:[#allocation2 + $0x30] sm:$0xff] %v1169
    %1246 = vst [vmem:[#allocation2 + $0x38] sm:$0xff] %v1172
    %1247 = vst [vmem:[#allocation2 + $0x40] sm:$0xff] %v1177
    %1248 = vst [vmem:[#allocation2 + $0x48] sm:$0xff] %v1180
    %1249 = vst [vmem:[#allocation2 + $0x50] sm:$0xff] %v1185
    %1250 = vst [vmem:[#allocation2 + $0x58] sm:$0xff] %v1188
    %1251 = vst [vmem:[#allocation2 + $0x60] sm:$0xff] %v1193
    %1252 = vst [vmem:[#allocation2 + $0x68] sm:$0xff] %v1196
    %1253 = vst [vmem:[#allocation2 + $0x70] sm:$0xff] %v1201
    %1254 = vst [vmem:[#allocation2 + $0x78] sm:$0xff] %v1204
    %1255 = vst [vmem:[#allocation2 + $0x80] sm:$0xff] %v1209
    %1256 = vst [vmem:[#allocation2 + $0x88] sm:$0xff] %v1212
    %1257 = vst [vmem:[#allocation2 + $0x90] sm:$0xff] %v1217
    %1258 = vst [vmem:[#allocation2 + $0x98] sm:$0xff] %v1220
    %1259 = vst [vmem:[#allocation2 + $0xa0] sm:$0xff] %v1225
    %1260 = vst [vmem:[#allocation2 + $0xa8] sm:$0xff] %v1228
    %1261 = vst [vmem:[#allocation2 + $0xb0] sm:$0xff] %v1233
    %1262 = vst [vmem:[#allocation2 + $0xb8] sm:$0xff] %v1236
    %v1263 = vld [vmem:[#allocation2 + $0x4] sm:$0xff]
    %v1264 = vld [vmem:[#allocation2 + $0xc] sm:$0xff]
    %v1265 = vld [vmem:[#allocation2 + $0x14] sm:$0xff]
    %v1266 = vld [vmem:[#allocation2 + $0x1c] sm:$0xff]
    %v1267 = vld [vmem:[#allocation2 + $0x24] sm:$0xff]
    %v1268 = vld [vmem:[#allocation2 + $0x2c] sm:$0xff]
    %v1269 = vld [vmem:[#allocation2 + $0x34] sm:$0xff]
    %v1270 = vld [vmem:[#allocation2 + $0x3c] sm:$0xff]
    %v1271 = vld [vmem:[#allocation2 + $0x44] sm:$0xff]
    %v1272 = vld [vmem:[#allocation2 + $0x4c] sm:$0xff]
    %v1273 = vld [vmem:[#allocation2 + $0x54] sm:$0xff]
    %v1274 = vld [vmem:[#allocation2 + $0x5c] sm:$0xff]
    %v1275 = vld [vmem:[#allocation2 + $0x64] sm:$0xff]
    %v1276 = vld [vmem:[#allocation2 + $0x6c] sm:$0xff]
    %v1277 = vld [vmem:[#allocation2 + $0x74] sm:$0xff]
    %v1278 = vld [vmem:[#allocation2 + $0x7c] sm:$0xff]
    %v1279 = vld [vmem:[#allocation2 + $0x84] sm:$0xff]
    %v1280 = vld [vmem:[#allocation2 + $0x8c] sm:$0xff]
    %v1281 = vld [vmem:[#allocation2 + $0x94] sm:$0xff]
    %v1282 = vld [vmem:[#allocation2 + $0x9c] sm:$0xff]
    %v1283 = vld [vmem:[#allocation2 + $0xa4] sm:$0xff]
    %v1284 = vld [vmem:[#allocation2 + $0xac] sm:$0xff]
    %v1285 = vld [vmem:[#allocation2 + $0xb4] sm:$0xff]
    %v1286 = vld [vmem:[#allocation2 + $0xbc] sm:$0xf]
    %v1287 = vld [vmem:[#allocation3] sm:$0xff]
    %v1288 = vld [vmem:[#allocation3 + $0x8] sm:$0xff]
    %v1289 = vld [vmem:[#allocation3 + $0x10] sm:$0xff]
    %v1290 = vld [vmem:[#allocation3 + $0x18] sm:$0xff]
    %v1291 = vld [vmem:[#allocation3 + $0x20] sm:$0xff]
    %v1292 = vld [vmem:[#allocation3 + $0x28] sm:$0xff]
    %v1293 = vld [vmem:[#allocation3 + $0x30] sm:$0xff]
    %v1294 = vld [vmem:[#allocation3 + $0x38] sm:$0xff]
    %v1295 = vld [vmem:[#allocation3 + $0x40] sm:$0xff]
    %v1296 = vld [vmem:[#allocation3 + $0x48] sm:$0xff]
    %v1297 = vld [vmem:[#allocation3 + $0x50] sm:$0xff]
    %v1298 = vld [vmem:[#allocation3 + $0x58] sm:$0xff]
    %v1299 = vld [vmem:[#allocation3 + $0x60] sm:$0xff]
    %v1300 = vld [vmem:[#allocation3 + $0x68] sm:$0xff]
    %v1301 = vld [vmem:[#allocation3 + $0x70] sm:$0xff]
    %v1302 = vld [vmem:[#allocation3 + $0x78] sm:$0xff]
    %v1303 = vld [vmem:[#allocation3 + $0x80] sm:$0xff]
    %v1304 = vld [vmem:[#allocation3 + $0x88] sm:$0xff]
    %v1305 = vld [vmem:[#allocation3 + $0x90] sm:$0xff]
    %v1306 = vld [vmem:[#allocation3 + $0x98] sm:$0xff]
    %v1307 = vld [vmem:[#allocation3 + $0xa0] sm:$0xff]
    %v1308 = vld [vmem:[#allocation3 + $0xa8] sm:$0xff]
    %v1309 = vld [vmem:[#allocation3 + $0xb0] sm:$0xff]
    %v1310 = vld [vmem:[#allocation3 + $0xb8] sm:$0xf]
    %v1311 = vadd.f32 %v1287, %v1263
    %v1312 = vadd.f32 %v1288, %v1264
    %v1313 = vadd.f32 %v1289, %v1265
    %v1314 = vadd.f32 %v1290, %v1266
    %v1315 = vadd.f32 %v1291, %v1267
    %v1316 = vadd.f32 %v1292, %v1268
    %v1317 = vadd.f32 %v1293, %v1269
    %v1318 = vadd.f32 %v1294, %v1270
    %v1319 = vadd.f32 %v1295, %v1271
    %v1320 = vadd.f32 %v1296, %v1272
    %v1321 = vadd.f32 %v1297, %v1273
    %v1322 = vadd.f32 %v1298, %v1274
    %v1323 = vadd.f32 %v1299, %v1275
    %v1324 = vadd.f32 %v1300, %v1276
    %v1325 = vadd.f32 %v1301, %v1277
    %v1326 = vadd.f32 %v1302, %v1278
    %v1327 = vadd.f32 %v1303, %v1279
    %v1328 = vadd.f32 %v1304, %v1280
    %v1329 = vadd.f32 %v1305, %v1281
    %v1330 = vadd.f32 %v1306, %v1282
    %v1331 = vadd.f32 %v1307, %v1283
    %v1332 = vadd.f32 %v1308, %v1284
    %v1333 = vadd.f32 %v1309, %v1285
    %v1334 = vadd.f32 %v1310, %v1286
    %1335 = vst [vmem:[#allocation3] sm:$0xff] %v1311
    %1336 = vst [vmem:[#allocation3 + $0x8] sm:$0xff] %v1312
    %1337 = vst [vmem:[#allocation3 + $0x10] sm:$0xff] %v1313
    %1338 = vst [vmem:[#allocation3 + $0x18] sm:$0xff] %v1314
    %1339 = vst [vmem:[#allocation3 + $0x20] sm:$0xff] %v1315
    %1340 = vst [vmem:[#allocation3 + $0x28] sm:$0xff] %v1316
    %1341 = vst [vmem:[#allocation3 + $0x30] sm:$0xff] %v1317
    %1342 = vst [vmem:[#allocation3 + $0x38] sm:$0xff] %v1318
    %1343 = vst [vmem:[#allocation3 + $0x40] sm:$0xff] %v1319
    %1344 = vst [vmem:[#allocation3 + $0x48] sm:$0xff] %v1320
    %1345 = vst [vmem:[#allocation3 + $0x50] sm:$0xff] %v1321
    %1346 = vst [vmem:[#allocation3 + $0x58] sm:$0xff] %v1322
    %1347 = vst [vmem:[#allocation3 + $0x60] sm:$0xff] %v1323
    %1348 = vst [vmem:[#allocation3 + $0x68] sm:$0xff] %v1324
    %1349 = vst [vmem:[#allocation3 + $0x70] sm:$0xff] %v1325
    %1350 = vst [vmem:[#allocation3 + $0x78] sm:$0xff] %v1326
    %1351 = vst [vmem:[#allocation3 + $0x80] sm:$0xff] %v1327
    %1352 = vst [vmem:[#allocation3 + $0x88] sm:$0xff] %v1328
    %1353 = vst [vmem:[#allocation3 + $0x90] sm:$0xff] %v1329
    %1354 = vst [vmem:[#allocation3 + $0x98] sm:$0xff] %v1330
    %1355 = vst [vmem:[#allocation3 + $0xa0] sm:$0xff] %v1331
    %1356 = vst [vmem:[#allocation3 + $0xa8] sm:$0xff] %v1332
    %1357 = vst [vmem:[#allocation3 + $0xb0] sm:$0xff] %v1333
    %1358 = vst [vmem:[#allocation3 + $0xb8] sm:$0xf] %v1334
    %v1359 = vld [vmem:[%s2] sm:$0x1]
    %v1360 = vld [vmem:[#allocation3] sm:$0xff]
    %v1361 = vld [vmem:[#allocation3 + $0x8] sm:$0x3f]
    %vm1362 = vcmask 1045504
    %v1363 = vsel %vm1362, %v1361, -inf
    %v1364 = vmax.f32 %v1360, %v1363
    %v1365 = vrot.slane %v1364, 4
    %v1366 = vmax.f32 %v1364, %v1365
    %v1367 = vrot.slane %v1366, 2
    %v1368 = vmax.f32 %v1366, %v1367
    %v1369 = vrot.slane %v1368, 1
    %v1370 = vmax.f32 %v1368, %v1369
    %v1371 = vadd.f32 %v1370, %v1359
    %1372 = vst [vmem:[#allocation4] sm:$0x1] %v1371
    %v1373 = vld [vmem:[#allocation3 + $0x18] sm:$0xff]
    %v1374 = vld [vmem:[#allocation3 + $0x20] sm:$0x3f]
    %v1375 = vsel %vm1362, %v1374, -inf
    %v1376 = vmax.f32 %v1373, %v1375
    %v1377 = vrot.slane %v1376, 4
    %v1378 = vmax.f32 %v1376, %v1377
    %v1379 = vrot.slane %v1378, 2
    %v1380 = vmax.f32 %v1378, %v1379
    %v1381 = vrot.slane %v1380, 1
    %v1382 = vmax.f32 %v1380, %v1381
    %v1383 = vadd.f32 %v1382, %v1359
    %1384 = vst [vmem:[#allocation4 + $0x1] sm:$0x1] %v1383
    %v1385 = vld [vmem:[#allocation3 + $0x30] sm:$0xff]
    %v1386 = vld [vmem:[#allocation3 + $0x38] sm:$0x3f]
    %v1387 = vsel %vm1362, %v1386, -inf
    %v1388 = vmax.f32 %v1385, %v1387
    %v1389 = vrot.slane %v1388, 4
    %v1390 = vmax.f32 %v1388, %v1389
    %v1391 = vrot.slane %v1390, 2
    %v1392 = vmax.f32 %v1390, %v1391
    %v1393 = vrot.slane %v1392, 1
    %v1394 = vmax.f32 %v1392, %v1393
    %v1395 = vadd.f32 %v1394, %v1359
    %1396 = vst [vmem:[#allocation4 + $0x2] sm:$0x1] %v1395
    %v1397 = vld [vmem:[#allocation3 + $0x48] sm:$0xff]
    %v1398 = vld [vmem:[#allocation3 + $0x50] sm:$0x3f]
    %v1399 = vsel %vm1362, %v1398, -inf
    %v1400 = vmax.f32 %v1397, %v1399
    %v1401 = vrot.slane %v1400, 4
    %v1402 = vmax.f32 %v1400, %v1401
    %v1403 = vrot.slane %v1402, 2
    %v1404 = vmax.f32 %v1402, %v1403
    %v1405 = vrot.slane %v1404, 1
    %v1406 = vmax.f32 %v1404, %v1405
    %v1407 = vadd.f32 %v1406, %v1359
    %1408 = vst [vmem:[#allocation4 + $0x3] sm:$0x1] %v1407
    %v1409 = vld [vmem:[#allocation3 + $0x60] sm:$0xff]
    %v1410 = vld [vmem:[#allocation3 + $0x68] sm:$0x3f]
    %v1411 = vsel %vm1362, %v1410, -inf
    %v1412 = vmax.f32 %v1409, %v1411
    %v1413 = vrot.slane %v1412, 4
    %v1414 = vmax.f32 %v1412, %v1413
    %v1415 = vrot.slane %v1414, 2
    %v1416 = vmax.f32 %v1414, %v1415
    %v1417 = vrot.slane %v1416, 1
    %v1418 = vmax.f32 %v1416, %v1417
    %v1419 = vadd.f32 %v1418, %v1359
    %1420 = vst [vmem:[#allocation4 + $0x4] sm:$0x1] %v1419
    %v1421 = vld [vmem:[#allocation3 + $0x78] sm:$0xff]
    %v1422 = vld [vmem:[#allocation3 + $0x80] sm:$0x3f]
    %v1423 = vsel %vm1362, %v1422, -inf
    %v1424 = vmax.f32 %v1421, %v1423
    %v1425 = vrot.slane %v1424, 4
    %v1426 = vmax.f32 %v1424, %v1425
    %v1427 = vrot.slane %v1426, 2
    %v1428 = vmax.f32 %v1426, %v1427
    %v1429 = vrot.slane %v1428, 1
    %v1430 = vmax.f32 %v1428, %v1429
    %v1431 = vadd.f32 %v1430, %v1359
    %1432 = vst [vmem:[#allocation4 + $0x5] sm:$0x1] %v1431
    %v1433 = vld [vmem:[#allocation3 + $0x90] sm:$0xff]
    %v1434 = vld [vmem:[#allocation3 + $0x98] sm:$0x3f]
    %v1435 = vsel %vm1362, %v1434, -inf
    %v1436 = vmax.f32 %v1433, %v1435
    %v1437 = vrot.slane %v1436, 4
    %v1438 = vmax.f32 %v1436, %v1437
    %v1439 = vrot.slane %v1438, 2
    %v1440 = vmax.f32 %v1438, %v1439
    %v1441 = vrot.slane %v1440, 1
    %v1442 = vmax.f32 %v1440, %v1441
    %v1443 = vadd.f32 %v1442, %v1359
    %1444 = vst [vmem:[#allocation4 + $0x6] sm:$0x1] %v1443
    %v1445 = vld [vmem:[#allocation3 + $0xa8] sm:$0xff]
    %v1446 = vld [vmem:[#allocation3 + $0xb0] sm:$0x3f]
    %v1447 = vsel %vm1362, %v1446, -inf
    %v1448 = vmax.f32 %v1445, %v1447
    %v1449 = vrot.slane %v1448, 4
    %v1450 = vmax.f32 %v1448, %v1449
    %v1451 = vrot.slane %v1450, 2
    %v1452 = vmax.f32 %v1450, %v1451
    %v1453 = vrot.slane %v1452, 1
    %v1454 = vmax.f32 %v1452, %v1453
    %v1455 = vadd.f32 %v1454, %v1359
    %1456 = vst [vmem:[#allocation4 + $0x7] sm:$0x1] %v1455
    // Predicated region
    $region14: #{tpu_custom_call.1} parent=1 // pred_check
      _
    $region15: #{tpu_custom_call.1} parent=1 // pred_check_branch
      %1458 = sbr.rel (0) target = $region17
    $region16: #{tpu_custom_call.1} parent=1 // pred_region
      %s1460 = ssub.s32 128, 128
      %1461 = vsyncadd [#allocation5], %s1460
      %s1463 = sshll.u32 [#allocation4], 4
      %s1464 = int_to_ptr.vmem [resolvable:$true] %s1463
      %1466 = dma.vmem_to_hbm [thread:$0]  %s1464, 128, %s3, [#allocation5]
    $region17: #{tpu_custom_call.1} parent=1 // pred_fallthru
      _
    // Predicated region
    $region18: #{tpu_custom_call.1} parent=1 // pred_check
      _
    $region19: #{tpu_custom_call.1} parent=1 // pred_check_branch
      %1468 = sbr.rel (0) target = $region21
    $region20: #{tpu_custom_call.1} parent=1 // pred_region
      %1469 = dma.done [#allocation5], 128
    $region21: #{tpu_custom_call.1} parent=1 // pred_fallthru
      _
    %1470 = vsyncpa [#allocation5], 1

</llo_original>
